<compile_context>
chip_gen: v5e
topology: v5e:2x2
jax: 0.10.0
libtpu: 0.0.40
codegen_flags: <defaults>
</compile_context>

<pallas_src>
import functools

import jax
import jax.numpy as jnp
from jax.experimental import pallas as pl
from jax.experimental.pallas import tpu as pltpu

EPS = 1e-06


def _hist_kernel(pix_ref, out_ref, acc_ref, *, h, n_pix, tile_n, sigma,
                 intensity_scale, method, thresh_eps):
    """Grid = (batch, pixel-tile).

    pix_ref : (1, 3, TN)   clamped pixels; channels on sublanes, pixels on lanes
    out_ref : (1, 3, h, h) normalized RGB-uv histogram (written at k == last)
    acc_ref : (3, h, h)    VMEM accumulator, persists across the pixel-tile axis
    """
    k = pl.program_id(1)
    nk = pl.num_programs(1)

    @pl.when(k == 0)
    def _():
        acc_ref[...] = jnp.zeros_like(acc_ref)

    p = pix_ref[0]                                    # (3, TN)

    # Mask out the zero-padded tail of the pixel axis.
    lane = jax.lax.broadcasted_iota(jnp.int32, (1, tile_n), 1)
    valid = ((k * tile_n + lane) < n_pix).astype(jnp.float32)   # (1, TN)

    logp = jnp.log(p + EPS)                           # (3, TN)

    if intensity_scale:
        p2 = p * p
        iy = jnp.sqrt(p2[0:1, :] + p2[1:2, :] + p2[2:3, :] + EPS) * valid
    else:
        iy = valid                                    # (1, TN)

    # Histogram bin centers as an (h, 1) column: linspace(-3, 3, h).
    bins = (jax.lax.broadcasted_iota(jnp.int32, (h, 1), 0).astype(jnp.float32)
            * (6.0 / (h - 1)) - 3.0)

    inv_sigma2 = 1.0 / (sigma * sigma)

    def weights(c, o):
        # (h, TN) weight matrix for the chroma coordinate log(p_c) - log(p_o).
        d = jnp.abs((logp[c:c + 1, :] - logp[o:o + 1, :]) - bins)   # (h, TN)
        if method == 'inverse-quadratic':
            return pl.reciprocal(1.0 + (d * d) * inv_sigma2, approx=True)
        elif method == 'RBF':
            return jnp.exp(-(d * d) * inv_sigma2)
        elif method == 'thresholding':
            return (d <= thresh_eps * 0.5).astype(jnp.float32)
        else:
            raise ValueError(f'unknown method {method}')

    # Channel c: u = log(c) - log(u_ch), v = log(c) - log(v_ch).
    for c, (u_ch, v_ch) in enumerate(((1, 2), (0, 2), (0, 1))):
        wu = weights(c, u_ch)                         # (h, TN)
        wv = weights(c, v_ch)                         # (h, TN)
        a = iy * wu                                   # (h, TN)
        # hist[j, jj] = sum_n Iy[n] * wu[j, n] * wv[jj, n]  (contract lanes)
        hist = jax.lax.dot_general(
            a, wv,
            dimension_numbers=(((1,), (1,)), ((), ())),
            preferred_element_type=jnp.float32)       # (h, h)
        acc_ref[c] += hist

    @pl.when(k == nk - 1)
    def _():
        total = (jnp.sum(acc_ref[0]) + jnp.sum(acc_ref[1])
                 + jnp.sum(acc_ref[2]) + EPS)
        inv = 1.0 / total                             # exact: once per image
        out_ref[0, 0] = acc_ref[0] * inv
        out_ref[0, 1] = acc_ref[1] * inv
        out_ref[0, 2] = acc_ref[2] * inv


def _round_up(x, m):
    return ((x + m - 1) // m) * m


def rgb_uv_hist_block(x, *, h=64, insz=150, resizing='interpolation',
                      method='inverse-quadratic', sigma=0.02,
                      intensity_scale=True, tile_n=2048):
    """Pallas implementation of RGBuvHistBlock.forward. x is NCHW float32."""
    x = jnp.clip(x.astype(jnp.float32), 0.0, 1.0)
    B, C, H, W = x.shape
    if C < 3:
        raise ValueError('RGBuvHistBlock expects at least 3 channels')

    if H > insz or W > insz:
        if resizing == 'interpolation':
            # TODO(synk): PyTorch F.interpolate(bilinear, align_corners=False,
            # antialias=False) differs slightly from jax.image.resize (which
            # antialiases on downscale).
            x = jax.image.resize(x, (B, C, insz, insz), method='bilinear')
            H, W = insz, insz
        elif resizing == 'sampling':
            # np.linspace(0, H, h, endpoint=False) cast to long == floor(i*H/h)
            inds_1 = jnp.floor(jnp.arange(h) * (H / h)).astype(jnp.int32)
            inds_2 = jnp.floor(jnp.arange(h) * (W / h)).astype(jnp.int32)
            x = x[:, :, inds_1, :][:, :, :, inds_2]
            H, W = h, h
        else:
            raise ValueError(f'Wrong resizing method: {resizing}')

    if C > 3:
        x = x[:, :3]

    N = H * W
    # (B, 3, N): channels on sublanes, pixels on lanes -- plain reshape, no
    # transpose / relayout in HBM.
    pix = x.reshape(B, 3, N)

    tn = min(tile_n, _round_up(N, 128))
    n_pad = _round_up(N, tn)
    if n_pad != N:
        pix = jnp.pad(pix, ((0, 0), (0, 0), (0, n_pad - N)))
    nk = n_pad // tn

    kernel = functools.partial(
        _hist_kernel, h=h, n_pix=N, tile_n=tn, sigma=sigma,
        intensity_scale=intensity_scale, method=method, thresh_eps=6.0 / h)

    out = pl.pallas_call(
        kernel,
        out_shape=jax.ShapeDtypeStruct((B, 3, h, h), jnp.float32),
        grid_spec=pltpu.PrefetchScalarGridSpec(
            num_scalar_prefetch=0,
            grid=(B, nk),
            in_specs=[
                pl.BlockSpec((1, 3, tn), lambda b, k: (b, 0, k)),
            ],
            out_specs=pl.BlockSpec((1, 3, h, h), lambda b, k: (b, 0, 0, 0)),
            scratch_shapes=[pltpu.VMEM((3, h, h), jnp.float32)],
        ),
        compiler_params=pltpu.CompilerParams(
            dimension_semantics=("parallel", "arbitrary")),
    )(pix)
    return out


def _reference_jax(x, *, h=64, method='inverse-quadratic', sigma=0.02,
                   intensity_scale=True):
    """Pure-JAX reference mirroring the PyTorch forward (no resize path)."""
    x = jnp.clip(x.astype(jnp.float32), 0.0, 1.0)[:, :3]
    B, _, H, W = x.shape
    bins = jnp.linspace(-3.0, 3.0, h)[None, :]
    I = jnp.transpose(x.reshape(B, 3, H * W), (0, 2, 1))        # (B, N, 3)
    logI = jnp.log(I + EPS)
    if intensity_scale:
        Iy = jnp.sqrt(jnp.sum(I * I, axis=-1, keepdims=True) + EPS)
    else:
        Iy = jnp.ones((B, I.shape[1], 1), jnp.float32)

    def chan(c, u, v):
        du = jnp.abs((logI[:, :, c:c + 1] - logI[:, :, u:u + 1]) - bins)
        dv = jnp.abs((logI[:, :, c:c + 1] - logI[:, :, v:v + 1]) - bins)
        wu = 1.0 / (1.0 + (du ** 2) / sigma ** 2)
        wv = 1.0 / (1.0 + (dv ** 2) / sigma ** 2)
        return jnp.einsum('bnh,bnk->bhk', Iy * wu, wv)

    hists = jnp.stack([chan(0, 1, 2), chan(1, 0, 2), chan(2, 0, 1)], axis=1)
    norm = jnp.sum(hists, axis=(1, 2, 3)).reshape(-1, 1, 1, 1) + EPS
    return hists / norm


if __name__ == "__main__":
    key = jax.random.PRNGKey(0)
    # batch=2, channels=4 (exercises the channel slice + clamp), spatial 16x16.
    x = jax.random.uniform(key, (2, 4, 16, 16), dtype=jnp.float32,
                           minval=-0.1, maxval=1.1)
    out = jax.block_until_ready(rgb_uv_hist_block(x, h=64))
    ref = jax.block_until_ready(_reference_jax(x, h=64))
    assert out.shape == (2, 3, 64, 64)
    # approx-reciprocal weights (EUP) + MXU f32 accumulation vs the exact
    # pure-JAX reference: allow a slightly looser tolerance than exact math.
    assert jnp.allclose(out, ref, atol=5e-4, rtol=5e-3), "mismatch vs reference"

    # Multi-tile path: N = 20*19 = 380 forces padding + masked tail and, with
    # tile_n=128, accumulation over several pixel tiles.
    x2 = jax.random.uniform(jax.random.PRNGKey(1), (1, 3, 20, 19),
                            dtype=jnp.float32, minval=-0.1, maxval=1.1)
    out2 = jax.block_until_ready(rgb_uv_hist_block(x2, h=64, tile_n=128))
    ref2 = jax.block_until_ready(_reference_jax(x2, h=64))
    assert out2.shape == (1, 3, 64, 64)
    assert jnp.allclose(out2, ref2, atol=5e-4, rtol=5e-3), "tiled mismatch"

    print("KERNEL_OK")
</pallas_src>

<mosaic_0001>
module attributes {stable_mosaic.version = 11 : i64} {
  func.func @_hist_kernel(%arg0: i32, %arg1: i32, %arg2: memref<1x3x256xf32, #tpu.memory_space<vmem>>, %arg3: memref<1x3x64x64xf32, #tpu.memory_space<vmem>>, %arg4: memref<3x64x64xf32, #tpu.memory_space<vmem>>) attributes {dimension_semantics = [#tpu.dimension_semantics<parallel>, #tpu.dimension_semantics<arbitrary>], iteration_bounds = array<i64: 2, 1>, scalar_prefetch = 0 : i64, scratch_operands = 1 : i64, tpu.core_type = #tpu.core_type<tc>, window_params = [{transform_indices = @transform_0, window_bounds = array<i64: 1, 3, 256>}, {transform_indices = @transform_1, window_bounds = array<i64: 1, 3, 64, 64>}]} {
    %c0_i32 = arith.constant 0 : i32
    %0 = arith.cmpi eq, %arg1, %c0_i32 : i32
    %1 = arith.extui %0 : i1 to i32
    %c0_i32_0 = arith.constant 0 : i32
    %2 = arith.cmpi ne, %1, %c0_i32_0 : i32
    scf.if %2 {
      %cst_40 = arith.constant 0.000000e+00 : f32
      %140 = vector.broadcast %cst_40 : f32 to vector<3x64x64xf32>
      %c0_41 = arith.constant 0 : index
      %c0_42 = arith.constant 0 : index
      %c0_43 = arith.constant 0 : index
      %141 = vector.load %arg4[%c0_41, %c0_42, %c0_43] : memref<3x64x64xf32, #tpu.memory_space<vmem>>, vector<3x64x64xf32>
      tpu.vector_store %arg4[%c0_41, %c0_42, %c0_43], %140 {strides = array<i32>} : memref<3x64x64xf32, #tpu.memory_space<vmem>>, vector<3x64x64xf32>,
    } else {
    }
    %c0 = arith.constant 0 : index
    %c0_1 = arith.constant 0 : index
    %c0_2 = arith.constant 0 : index
    %3 = vector.load %arg2[%c0, %c0_1, %c0_2] : memref<1x3x256xf32, #tpu.memory_space<vmem>>, vector<1x3x256xf32>
    %4 = vector.shape_cast %3 : vector<1x3x256xf32> to vector<3x256xf32>
    %5 = tpu.iota {dimensions = array<i32: 1>} : vector<1x256xi32>
    %c256_i32 = arith.constant 256 : i32
    %6 = arith.muli %arg1, %c256_i32 : i32
    %7 = vector.broadcast %6 : i32 to vector<1x256xi32>
    %8 = arith.addi %7, %5 : vector<1x256xi32>
    %c256_i32_3 = arith.constant 256 : i32
    %9 = vector.broadcast %c256_i32_3 : i32 to vector<1x256xi32>
    %10 = arith.cmpi slt, %8, %9 : vector<1x256xi32>
    %11 = arith.extui %10 : vector<1x256xi1> to vector<1x256xi32>
    %12 = arith.sitofp %11 : vector<1x256xi32> to vector<1x256xf32>
    %cst = arith.constant 9.99999997E-7 : f32
    %13 = vector.broadcast %cst : f32 to vector<3x256xf32>
    %14 = arith.addf %4, %13 : vector<3x256xf32>
    %15 = math.log %14 : vector<3x256xf32>
    %16 = arith.mulf %4, %4 : vector<3x256xf32>
    %17 = vector.extract_strided_slice %16 {offsets = [0, 0], sizes = [1, 256], strides = [1, 1]} : vector<3x256xf32> to vector<1x256xf32>
    %18 = vector.extract_strided_slice %16 {offsets = [1, 0], sizes = [1, 256], strides = [1, 1]} : vector<3x256xf32> to vector<1x256xf32>
    %19 = arith.addf %17, %18 : vector<1x256xf32>
    %20 = vector.extract_strided_slice %16 {offsets = [2, 0], sizes = [1, 256], strides = [1, 1]} : vector<3x256xf32> to vector<1x256xf32>
    %21 = arith.addf %19, %20 : vector<1x256xf32>
    %cst_4 = arith.constant 9.99999997E-7 : f32
    %22 = vector.broadcast %cst_4 : f32 to vector<1x256xf32>
    %23 = arith.addf %21, %22 : vector<1x256xf32>
    %24 = math.sqrt %23 : vector<1x256xf32>
    %25 = arith.mulf %24, %12 : vector<1x256xf32>
    %26 = tpu.iota {dimensions = array<i32: 0>} : vector<64x1xi32>
    %27 = arith.sitofp %26 : vector<64x1xi32> to vector<64x1xf32>
    %cst_5 = arith.constant 0.095238097 : f32
    %28 = vector.broadcast %cst_5 : f32 to vector<64x1xf32>
    %29 = arith.mulf %27, %28 : vector<64x1xf32>
    %cst_6 = arith.constant 3.000000e+00 : f32
    %30 = vector.broadcast %cst_6 : f32 to vector<64x1xf32>
    %31 = arith.subf %29, %30 : vector<64x1xf32>
    %32 = vector.extract_strided_slice %15 {offsets = [0, 0], sizes = [1, 256], strides = [1, 1]} : vector<3x256xf32> to vector<1x256xf32>
    %33 = vector.extract_strided_slice %15 {offsets = [1, 0], sizes = [1, 256], strides = [1, 1]} : vector<3x256xf32> to vector<1x256xf32>
    %34 = arith.subf %32, %33 : vector<1x256xf32>
    %35 = vector.broadcast %34 : vector<1x256xf32> to vector<64x256xf32>
    %36 = vector.broadcast %31 : vector<64x1xf32> to vector<64x256xf32>
    %37 = arith.subf %35, %36 : vector<64x256xf32>
    %38 = math.absf %37 : vector<64x256xf32>
    %39 = arith.mulf %38, %38 : vector<64x256xf32>
    %cst_7 = arith.constant 2.500000e+03 : f32
    %40 = vector.broadcast %cst_7 : f32 to vector<64x256xf32>
    %41 = arith.mulf %39, %40 : vector<64x256xf32>
    %cst_8 = arith.constant 1.000000e+00 : f32
    %42 = vector.broadcast %cst_8 : f32 to vector<64x256xf32>
    %43 = arith.addf %42, %41 : vector<64x256xf32>
    %44 = tpu.reciprocal %43 {approx = true} : vector<64x256xf32> -> vector<64x256xf32>
    %45 = vector.extract_strided_slice %15 {offsets = [0, 0], sizes = [1, 256], strides = [1, 1]} : vector<3x256xf32> to vector<1x256xf32>
    %46 = vector.extract_strided_slice %15 {offsets = [2, 0], sizes = [1, 256], strides = [1, 1]} : vector<3x256xf32> to vector<1x256xf32>
    %47 = arith.subf %45, %46 : vector<1x256xf32>
    %48 = vector.broadcast %47 : vector<1x256xf32> to vector<64x256xf32>
    %49 = vector.broadcast %31 : vector<64x1xf32> to vector<64x256xf32>
    %50 = arith.subf %48, %49 : vector<64x256xf32>
    %51 = math.absf %50 : vector<64x256xf32>
    %52 = arith.mulf %51, %51 : vector<64x256xf32>
    %cst_9 = arith.constant 2.500000e+03 : f32
    %53 = vector.broadcast %cst_9 : f32 to vector<64x256xf32>
    %54 = arith.mulf %52, %53 : vector<64x256xf32>
    %cst_10 = arith.constant 1.000000e+00 : f32
    %55 = vector.broadcast %cst_10 : f32 to vector<64x256xf32>
    %56 = arith.addf %55, %54 : vector<64x256xf32>
    %57 = tpu.reciprocal %56 {approx = true} : vector<64x256xf32> -> vector<64x256xf32>
    %58 = vector.broadcast %25 : vector<1x256xf32> to vector<64x256xf32>
    %59 = arith.mulf %58, %44 : vector<64x256xf32>
    %cst_11 = arith.constant dense<0.000000e+00> : vector<64x64xf32>
    %60 = tpu.matmul %59, %57, %cst_11 {dimension_numbers = #tpu.dot_dimension_numbers<[1], [1], [0], [0], [0, 0, 1, 0], [], []>} : vector<64x256xf32>, vector<64x256xf32>, vector<64x64xf32> -> vector<64x64xf32>
    %c0_12 = arith.constant 0 : index
    %c0_13 = arith.constant 0 : index
    %c0_14 = arith.constant 0 : index
    %61 = vector.load %arg4[%c0_12, %c0_13, %c0_14] : memref<3x64x64xf32, #tpu.memory_space<vmem>>, vector<1x64x64xf32>
    %62 = vector.shape_cast %61 : vector<1x64x64xf32> to vector<64x64xf32>
    %63 = arith.addf %62, %60 : vector<64x64xf32>
    %c0_15 = arith.constant 0 : index
    %c0_16 = arith.constant 0 : index
    %c0_17 = arith.constant 0 : index
    %64 = vector.load %arg4[%c0_15, %c0_16, %c0_17] : memref<3x64x64xf32, #tpu.memory_space<vmem>>, vector<1x64x64xf32>
    %65 = vector.shape_cast %64 : vector<1x64x64xf32> to vector<64x64xf32>
    %66 = vector.shape_cast %63 : vector<64x64xf32> to vector<1x64x64xf32>
    tpu.vector_store %arg4[%c0_15, %c0_16, %c0_17], %66 {strides = array<i32>} : memref<3x64x64xf32, #tpu.memory_space<vmem>>, vector<1x64x64xf32>,
    %67 = vector.extract_strided_slice %15 {offsets = [1, 0], sizes = [1, 256], strides = [1, 1]} : vector<3x256xf32> to vector<1x256xf32>
    %68 = vector.extract_strided_slice %15 {offsets = [0, 0], sizes = [1, 256], strides = [1, 1]} : vector<3x256xf32> to vector<1x256xf32>
    %69 = arith.subf %67, %68 : vector<1x256xf32>
    %70 = vector.broadcast %69 : vector<1x256xf32> to vector<64x256xf32>
    %71 = vector.broadcast %31 : vector<64x1xf32> to vector<64x256xf32>
    %72 = arith.subf %70, %71 : vector<64x256xf32>
    %73 = math.absf %72 : vector<64x256xf32>
    %74 = arith.mulf %73, %73 : vector<64x256xf32>
    %cst_18 = arith.constant 2.500000e+03 : f32
    %75 = vector.broadcast %cst_18 : f32 to vector<64x256xf32>
    %76 = arith.mulf %74, %75 : vector<64x256xf32>
    %cst_19 = arith.constant 1.000000e+00 : f32
    %77 = vector.broadcast %cst_19 : f32 to vector<64x256xf32>
    %78 = arith.addf %77, %76 : vector<64x256xf32>
    %79 = tpu.reciprocal %78 {approx = true} : vector<64x256xf32> -> vector<64x256xf32>
    %80 = vector.extract_strided_slice %15 {offsets = [1, 0], sizes = [1, 256], strides = [1, 1]} : vector<3x256xf32> to vector<1x256xf32>
    %81 = vector.extract_strided_slice %15 {offsets = [2, 0], sizes = [1, 256], strides = [1, 1]} : vector<3x256xf32> to vector<1x256xf32>
    %82 = arith.subf %80, %81 : vector<1x256xf32>
    %83 = vector.broadcast %82 : vector<1x256xf32> to vector<64x256xf32>
    %84 = vector.broadcast %31 : vector<64x1xf32> to vector<64x256xf32>
    %85 = arith.subf %83, %84 : vector<64x256xf32>
    %86 = math.absf %85 : vector<64x256xf32>
    %87 = arith.mulf %86, %86 : vector<64x256xf32>
    %cst_20 = arith.constant 2.500000e+03 : f32
    %88 = vector.broadcast %cst_20 : f32 to vector<64x256xf32>
    %89 = arith.mulf %87, %88 : vector<64x256xf32>
    %cst_21 = arith.constant 1.000000e+00 : f32
    %90 = vector.broadcast %cst_21 : f32 to vector<64x256xf32>
    %91 = arith.addf %90, %89 : vector<64x256xf32>
    %92 = tpu.reciprocal %91 {approx = true} : vector<64x256xf32> -> vector<64x256xf32>
    %93 = vector.broadcast %25 : vector<1x256xf32> to vector<64x256xf32>
    %94 = arith.mulf %93, %79 : vector<64x256xf32>
    %cst_22 = arith.constant dense<0.000000e+00> : vector<64x64xf32>
    %95 = tpu.matmul %94, %92, %cst_22 {dimension_numbers = #tpu.dot_dimension_numbers<[1], [1], [0], [0], [0, 0, 1, 0], [], []>} : vector<64x256xf32>, vector<64x256xf32>, vector<64x64xf32> -> vector<64x64xf32>
    %c1 = arith.constant 1 : index
    %c0_23 = arith.constant 0 : index
    %c0_24 = arith.constant 0 : index
    %96 = vector.load %arg4[%c1, %c0_23, %c0_24] : memref<3x64x64xf32, #tpu.memory_space<vmem>>, vector<1x64x64xf32>
    %97 = vector.shape_cast %96 : vector<1x64x64xf32> to vector<64x64xf32>
    %98 = arith.addf %97, %95 : vector<64x64xf32>
    %c1_25 = arith.constant 1 : index
    %c0_26 = arith.constant 0 : index
    %c0_27 = arith.constant 0 : index
    %99 = vector.load %arg4[%c1_25, %c0_26, %c0_27] : memref<3x64x64xf32, #tpu.memory_space<vmem>>, vector<1x64x64xf32>
    %100 = vector.shape_cast %99 : vector<1x64x64xf32> to vector<64x64xf32>
    %101 = vector.shape_cast %98 : vector<64x64xf32> to vector<1x64x64xf32>
    tpu.vector_store %arg4[%c1_25, %c0_26, %c0_27], %101 {strides = array<i32>} : memref<3x64x64xf32, #tpu.memory_space<vmem>>, vector<1x64x64xf32>,
    %102 = vector.extract_strided_slice %15 {offsets = [2, 0], sizes = [1, 256], strides = [1, 1]} : vector<3x256xf32> to vector<1x256xf32>
    %103 = vector.extract_strided_slice %15 {offsets = [0, 0], sizes = [1, 256], strides = [1, 1]} : vector<3x256xf32> to vector<1x256xf32>
    %104 = arith.subf %102, %103 : vector<1x256xf32>
    %105 = vector.broadcast %104 : vector<1x256xf32> to vector<64x256xf32>
    %106 = vector.broadcast %31 : vector<64x1xf32> to vector<64x256xf32>
    %107 = arith.subf %105, %106 : vector<64x256xf32>
    %108 = math.absf %107 : vector<64x256xf32>
    %109 = arith.mulf %108, %108 : vector<64x256xf32>
    %cst_28 = arith.constant 2.500000e+03 : f32
    %110 = vector.broadcast %cst_28 : f32 to vector<64x256xf32>
    %111 = arith.mulf %109, %110 : vector<64x256xf32>
    %cst_29 = arith.constant 1.000000e+00 : f32
    %112 = vector.broadcast %cst_29 : f32 to vector<64x256xf32>
    %113 = arith.addf %112, %111 : vector<64x256xf32>
    %114 = tpu.reciprocal %113 {approx = true} : vector<64x256xf32> -> vector<64x256xf32>
    %115 = vector.extract_strided_slice %15 {offsets = [2, 0], sizes = [1, 256], strides = [1, 1]} : vector<3x256xf32> to vector<1x256xf32>
    %116 = vector.extract_strided_slice %15 {offsets = [1, 0], sizes = [1, 256], strides = [1, 1]} : vector<3x256xf32> to vector<1x256xf32>
    %117 = arith.subf %115, %116 : vector<1x256xf32>
    %118 = vector.broadcast %117 : vector<1x256xf32> to vector<64x256xf32>
    %119 = vector.broadcast %31 : vector<64x1xf32> to vector<64x256xf32>
    %120 = arith.subf %118, %119 : vector<64x256xf32>
    %121 = math.absf %120 : vector<64x256xf32>
    %122 = arith.mulf %121, %121 : vector<64x256xf32>
    %cst_30 = arith.constant 2.500000e+03 : f32
    %123 = vector.broadcast %cst_30 : f32 to vector<64x256xf32>
    %124 = arith.mulf %122, %123 : vector<64x256xf32>
    %cst_31 = arith.constant 1.000000e+00 : f32
    %125 = vector.broadcast %cst_31 : f32 to vector<64x256xf32>
    %126 = arith.addf %125, %124 : vector<64x256xf32>
    %127 = tpu.reciprocal %126 {approx = true} : vector<64x256xf32> -> vector<64x256xf32>
    %128 = vector.broadcast %25 : vector<1x256xf32> to vector<64x256xf32>
    %129 = arith.mulf %128, %114 : vector<64x256xf32>
    %cst_32 = arith.constant dense<0.000000e+00> : vector<64x64xf32>
    %130 = tpu.matmul %129, %127, %cst_32 {dimension_numbers = #tpu.dot_dimension_numbers<[1], [1], [0], [0], [0, 0, 1, 0], [], []>} : vector<64x256xf32>, vector<64x256xf32>, vector<64x64xf32> -> vector<64x64xf32>
    %c2 = arith.constant 2 : index
    %c0_33 = arith.constant 0 : index
    %c0_34 = arith.constant 0 : index
    %131 = vector.load %arg4[%c2, %c0_33, %c0_34] : memref<3x64x64xf32, #tpu.memory_space<vmem>>, vector<1x64x64xf32>
    %132 = vector.shape_cast %131 : vector<1x64x64xf32> to vector<64x64xf32>
    %133 = arith.addf %132, %130 : vector<64x64xf32>
    %c2_35 = arith.constant 2 : index
    %c0_36 = arith.constant 0 : index
    %c0_37 = arith.constant 0 : index
    %134 = vector.load %arg4[%c2_35, %c0_36, %c0_37] : memref<3x64x64xf32, #tpu.memory_space<vmem>>, vector<1x64x64xf32>
    %135 = vector.shape_cast %134 : vector<1x64x64xf32> to vector<64x64xf32>
    %136 = vector.shape_cast %133 : vector<64x64xf32> to vector<1x64x64xf32>
    tpu.vector_store %arg4[%c2_35, %c0_36, %c0_37], %136 {strides = array<i32>} : memref<3x64x64xf32, #tpu.memory_space<vmem>>, vector<1x64x64xf32>,
    %c0_i32_38 = arith.constant 0 : i32
    %137 = arith.cmpi eq, %arg1, %c0_i32_38 : i32
    %138 = arith.extui %137 : i1 to i32
    %c0_i32_39 = arith.constant 0 : i32
    %139 = arith.cmpi ne, %138, %c0_i32_39 : i32
    scf.if %139 {
      %c0_40 = arith.constant 0 : index
      %c0_41 = arith.constant 0 : index
      %c0_42 = arith.constant 0 : index
      %140 = vector.load %arg4[%c0_40, %c0_41, %c0_42] : memref<3x64x64xf32, #tpu.memory_space<vmem>>, vector<1x64x64xf32>
      %141 = vector.shape_cast %140 : vector<1x64x64xf32> to vector<64x64xf32>
      %142 = vector.shape_cast %141 : vector<64x64xf32> to vector<1x64x64xf32>
      %cst_43 = arith.constant dense<0.000000e+00> : vector<1xf32>
      %143 = vector.multi_reduction <add>, %142, %cst_43 [1, 2] : vector<1x64x64xf32> to vector<1xf32>
      %144 = vector.shape_cast %143 : vector<1xf32> to vector<1x1x1xf32>
      %145 = vector.extract %144[0, 0, 0] : f32 from vector<1x1x1xf32>
      %c1_44 = arith.constant 1 : index
      %c0_45 = arith.constant 0 : index
      %c0_46 = arith.constant 0 : index
      %146 = vector.load %arg4[%c1_44, %c0_45, %c0_46] : memref<3x64x64xf32, #tpu.memory_space<vmem>>, vector<1x64x64xf32>
      %147 = vector.shape_cast %146 : vector<1x64x64xf32> to vector<64x64xf32>
      %148 = vector.shape_cast %147 : vector<64x64xf32> to vector<1x64x64xf32>
      %cst_47 = arith.constant dense<0.000000e+00> : vector<1xf32>
      %149 = vector.multi_reduction <add>, %148, %cst_47 [1, 2] : vector<1x64x64xf32> to vector<1xf32>
      %150 = vector.shape_cast %149 : vector<1xf32> to vector<1x1x1xf32>
      %151 = vector.extract %150[0, 0, 0] : f32 from vector<1x1x1xf32>
      %152 = arith.addf %145, %151 : f32
      %c2_48 = arith.constant 2 : index
      %c0_49 = arith.constant 0 : index
      %c0_50 = arith.constant 0 : index
      %153 = vector.load %arg4[%c2_48, %c0_49, %c0_50] : memref<3x64x64xf32, #tpu.memory_space<vmem>>, vector<1x64x64xf32>
      %154 = vector.shape_cast %153 : vector<1x64x64xf32> to vector<64x64xf32>
      %155 = vector.shape_cast %154 : vector<64x64xf32> to vector<1x64x64xf32>
      %cst_51 = arith.constant dense<0.000000e+00> : vector<1xf32>
      %156 = vector.multi_reduction <add>, %155, %cst_51 [1, 2] : vector<1x64x64xf32> to vector<1xf32>
      %157 = vector.shape_cast %156 : vector<1xf32> to vector<1x1x1xf32>
      %158 = vector.extract %157[0, 0, 0] : f32 from vector<1x1x1xf32>
      %159 = arith.addf %152, %158 : f32
      %cst_52 = arith.constant 9.99999997E-7 : f32
      %160 = arith.addf %159, %cst_52 : f32
      %cst_53 = arith.constant 1.000000e+00 : f32
      %161 = arith.divf %cst_53, %160 : f32
      %c0_54 = arith.constant 0 : index
      %c0_55 = arith.constant 0 : index
      %c0_56 = arith.constant 0 : index
      %162 = vector.load %arg4[%c0_54, %c0_55, %c0_56] : memref<3x64x64xf32, #tpu.memory_space<vmem>>, vector<1x64x64xf32>
      %163 = vector.shape_cast %162 : vector<1x64x64xf32> to vector<64x64xf32>
      %164 = vector.broadcast %161 : f32 to vector<64x64xf32>
      %165 = arith.mulf %163, %164 : vector<64x64xf32>
      %c0_57 = arith.constant 0 : index
      %c0_58 = arith.constant 0 : index
      %c0_59 = arith.constant 0 : index
      %c0_60 = arith.constant 0 : index
      %166 = vector.load %arg3[%c0_57, %c0_58, %c0_59, %c0_60] : memref<1x3x64x64xf32, #tpu.memory_space<vmem>>, vector<1x1x64x64xf32>
      %167 = vector.shape_cast %166 : vector<1x1x64x64xf32> to vector<64x64xf32>
      %168 = vector.shape_cast %165 : vector<64x64xf32> to vector<1x1x64x64xf32>
      tpu.vector_store %arg3[%c0_57, %c0_58, %c0_59, %c0_60], %168 {strides = array<i32>} : memref<1x3x64x64xf32, #tpu.memory_space<vmem>>, vector<1x1x64x64xf32>,
      %c1_61 = arith.constant 1 : index
      %c0_62 = arith.constant 0 : index
      %c0_63 = arith.constant 0 : index
      %169 = vector.load %arg4[%c1_61, %c0_62, %c0_63] : memref<3x64x64xf32, #tpu.memory_space<vmem>>, vector<1x64x64xf32>
      %170 = vector.shape_cast %169 : vector<1x64x64xf32> to vector<64x64xf32>
      %171 = vector.broadcast %161 : f32 to vector<64x64xf32>
      %172 = arith.mulf %170, %171 : vector<64x64xf32>
      %c0_64 = arith.constant 0 : index
      %c1_65 = arith.constant 1 : index
      %c0_66 = arith.constant 0 : index
      %c0_67 = arith.constant 0 : index
      %173 = vector.load %arg3[%c0_64, %c1_65, %c0_66, %c0_67] : memref<1x3x64x64xf32, #tpu.memory_space<vmem>>, vector<1x1x64x64xf32>
      %174 = vector.shape_cast %173 : vector<1x1x64x64xf32> to vector<64x64xf32>
      %175 = vector.shape_cast %172 : vector<64x64xf32> to vector<1x1x64x64xf32>
      tpu.vector_store %arg3[%c0_64, %c1_65, %c0_66, %c0_67], %175 {strides = array<i32>} : memref<1x3x64x64xf32, #tpu.memory_space<vmem>>, vector<1x1x64x64xf32>,
      %c2_68 = arith.constant 2 : index
      %c0_69 = arith.constant 0 : index
      %c0_70 = arith.constant 0 : index
      %176 = vector.load %arg4[%c2_68, %c0_69, %c0_70] : memref<3x64x64xf32, #tpu.memory_space<vmem>>, vector<1x64x64xf32>
      %177 = vector.shape_cast %176 : vector<1x64x64xf32> to vector<64x64xf32>
      %178 = vector.broadcast %161 : f32 to vector<64x64xf32>
      %179 = arith.mulf %177, %178 : vector<64x64xf32>
      %c0_71 = arith.constant 0 : index
      %c2_72 = arith.constant 2 : index
      %c0_73 = arith.constant 0 : index
      %c0_74 = arith.constant 0 : index
      %180 = vector.load %arg3[%c0_71, %c2_72, %c0_73, %c0_74] : memref<1x3x64x64xf32, #tpu.memory_space<vmem>>, vector<1x1x64x64xf32>
      %181 = vector.shape_cast %180 : vector<1x1x64x64xf32> to vector<64x64xf32>
      %182 = vector.shape_cast %179 : vector<64x64xf32> to vector<1x1x64x64xf32>
      tpu.vector_store %arg3[%c0_71, %c2_72, %c0_73, %c0_74], %182 {strides = array<i32>} : memref<1x3x64x64xf32, #tpu.memory_space<vmem>>, vector<1x1x64x64xf32>,
    } else {
    }
    return
  }
  func.func @transform_0(%arg0: i32, %arg1: i32) -> (i32, i32, i32) {
    %c0_i32 = arith.constant 0 : i32
    %c0_i32_0 = arith.constant 0 : i32
    return %arg0, %c0_i32, %arg1 : i32, i32, i32
  }
  func.func @transform_1(%arg0: i32, %arg1: i32) -> (i32, i32, i32, i32) {
    %c0_i32 = arith.constant 0 : i32
    %c0_i32_0 = arith.constant 0 : i32
    %c0_i32_1 = arith.constant 0 : i32
    %c0_i32_2 = arith.constant 0 : i32
    return %arg0, %c0_i32, %c0_i32_0, %c0_i32_1 : i32, i32, i32, i32
  }
}

</mosaic_0001>

<llo_original>
// kernel: tpu_custom_call.1
$region0: #{tpu_custom_call.1}
  #allocation0 [shape = 'u32[]', space=smem, size = 0x4, offset = 0x4, fixed_abs, tag = 'smem constant byte address 0x4 - core index']
  #allocation1 [shape = 'u32[72,128]{1,0:T(1,128)}', space=vmem, size = 0x9000, scoped, tag = 'internal scratch']
  #allocation2 [shape = 'f32[3,64,64]{2,1,0:T(8,128)}', space=vmem, size = 0x18000, scoped, tag = 'scratch operand']
  %s0 = inlined_call_operand.vmem [shape: f32[2,3,256], index: 0, kind: input, shape index: {}]
  %s1 = inlined_call_operand.hbm [shape: f32[2,3,64,64], index: 1, kind: output, shape index: {}]
  %s2 = sld [smem:[#allocation0]]
  $region45: #{tpu_custom_call.1} parent=0
    _
  %s4 = ssub.s32 1, %s2
  %s5 = scalar_select 0, %s4, %s2
  $region1: #{tpu_custom_call.1} parent=0
    #allocation3 [shape = 'u8[196608]{0}', space=vmem, size = 0x30000, scoped, tag = 'output window, operand 0']
    #allocation4 [shape = 's32[2]{0}', space=sflag, size = 0x8, scoped, tag = 'scoped memory for tpu_custom_call.1']
    %6 = vsyncpa [#allocation4], 0
    %s7 = scalar_lea.sflag [#allocation4], 1
    %8 = vsyncpa %s7, 0
    loop: start=0, step=1, limit=4
    $region2: #{tpu_custom_call.1} parent=1 // loop_pre_header
      _
    $region3: #{tpu_custom_call.1} parent=1 // loop_header
      %s10 = sphi 0, %s14
      %p11 = scmp.ge.s32.totalorder %s10, 4
      %s17 = sphi 0, %s29
      %s18 = sphi 0, %s25
      %s19 = sphi 0, %s17
      %s20 = sphi 0, %s18
      %s21 = sphi 0, %s19
      %s22 = sphi 0, %s20
      %s34 = sphi 0, %s36
      %s37 = sphi 0, %s34
      %s38 = sphi 0, %s37
      %s54 = sphi 0, %s38
      %s60 = sphi 0, %s62
      %s63 = sphi 0, %s60
      %s64 = sphi 0, %s63
      %s80 = sphi 0, %s64
    $region4: #{tpu_custom_call.1} parent=1 // loop_header_branch
      %13 = sbr.rel (%p11) target = $region8
    $region5: #{tpu_custom_call.1} parent=1 // loop_body
      %s15 = ssub.s32 %s10, 1
      %s16 = ssub.s32 %s10, 2
      %s23 = sadd.s32 1, %s18
      %p24 = scmp.ge.s32.totalorder %s23, 1
      %s25 = scalar_select %p24, 0, %s23
      %s26 = sadd.s32 1, %s17
      %s27 = scalar_select %p24, %s26, %s17
      %p28 = scmp.ge.s32.totalorder %s27, 2
      %s29 = scalar_select %p28, 0, %s27
      %s30 = ssub.s32 %s17, %s29
      %s31 = ssub.s32 %s18, %s25
      %s32 = sor.u32 %s30, %s31
      %p33 = scmp.eq.s32.totalorder %s32, 0
      %s35 = sadd.s32 %s34, 1
      %s36 = scalar_select %p33, %s34, %s35
      %p39 = pneg %p33
      %p40 = scmp.eq.s32.totalorder %s10, 1
      %p41 = por %p39, %p40
      %p42 = scmp.ne.s32.totalorder %s34, %s37
      %p43 = scmp.eq.s32.totalorder %s10, 0
      %p44 = por %p42, %p43
      %p45 = scmp.ne.s32.totalorder %s34, %s37
      %p46 = scmp.eq.s32.totalorder %s15, 1
      %p47 = por %p45, %p46
      %p48 = scmp.ne.s32.totalorder %s37, %s38
      %p49 = scmp.eq.s32.totalorder %s15, 0
      %p50 = por %p48, %p49
      %p51 = scmp.ne.s32.totalorder %s37, %s38
      %p52 = scmp.eq.s32.totalorder %s16, 1
      %p53 = por %p51, %p52
      %p55 = scmp.ne.s32.totalorder %s38, %s54
      %p56 = scmp.eq.s32.totalorder %s16, 0
      %p57 = por %p55, %p56
      %s58 = ssub.s32 %s17, %s29
      %p59 = scmp.eq.s32.totalorder %s58, 0
      %s61 = sadd.s32 %s60, 1
      %s62 = scalar_select %p59, %s60, %s61
      %p65 = pneg %p59
      %p66 = scmp.eq.s32.totalorder %s10, 1
      %p67 = por %p65, %p66
      %p68 = scmp.ne.s32.totalorder %s60, %s63
      %p69 = scmp.eq.s32.totalorder %s10, 0
      %p70 = por %p68, %p69
      %p71 = scmp.ne.s32.totalorder %s60, %s63
      %p72 = scmp.eq.s32.totalorder %s15, 1
      %p73 = por %p71, %p72
      %p74 = scmp.ne.s32.totalorder %s63, %s64
      %p75 = scmp.eq.s32.totalorder %s15, 0
      %p76 = por %p74, %p75
      %p77 = scmp.ne.s32.totalorder %s63, %s64
      %p78 = scmp.eq.s32.totalorder %s16, 1
      %p79 = por %p77, %p78
      %p81 = scmp.ne.s32.totalorder %s64, %s80
      %p82 = scmp.eq.s32.totalorder %s16, 0
      %p83 = por %p81, %p82
      %p84 = scmp.le.s32.totalorder 1, %s10
      %p85 = scmp.lt.s32.totalorder %s10, 3
      %p86 = pnand %p84, %p85
      %p87 = pneg %p86
      // Predicated region
      $region9: #{tpu_custom_call.1} parent=5 // pred_check
        _
      $region10: #{tpu_custom_call.1} parent=5 // pred_check_branch
        %89 = sbr.rel (%p86) target = $region12
      $region11: #{tpu_custom_call.1} parent=5 // pred_region
        %s90 = ssub.s32 %s10, 1
      $region12: #{tpu_custom_call.1} parent=5 // pred_fallthru
        _
      %p91 = scmp.lt.s32.totalorder %s10, 2
      // Predicated region
      $region13: #{tpu_custom_call.1} parent=5 // pred_check
        %p92 = pneg %p91
      $region14: #{tpu_custom_call.1} parent=5 // pred_check_branch
        %94 = sbr.rel (%p92) target = $region16
      $region15: #{tpu_custom_call.1} parent=5 // pred_region
        // Predicated region
        $region17: #{tpu_custom_call.1} parent=15 // pred_check
          %p95 = pneg %p44
        $region18: #{tpu_custom_call.1} parent=15 // pred_check_branch
          %97 = sbr.rel (%p95) target = $region20
        $region19: #{tpu_custom_call.1} parent=15 // pred_region
          %s98 = smul.u32 2, %s18
          %p99 = scmp.lt.s32.totalorder %s17, 1
          %s100 = scalar_select %p99, %s17, 1
          %p101 = scmp.lt.s32.totalorder %s98, 1
          %s102 = scalar_select %p101, %s98, 1
          %s103 = smul.addr %s100, 2
          %s104 = sadd.s32 %s102, %s103
          %s105 = smul.addr %s104, 4
          %s106 = scalar_lea.vmem %s0, %s105
          %s107 = smul.u32 2, %s18
        $region20: #{tpu_custom_call.1} parent=15 // pred_fallthru
          _
      $region16: #{tpu_custom_call.1} parent=5 // pred_fallthru
        _
      %p108 = scmp.le.s32.totalorder 1, %s10
      %p109 = scmp.lt.s32.totalorder %s10, 3
      %p110 = pnand %p108, %p109
      %p111 = pneg %p110
      // Predicated region
      $region21: #{tpu_custom_call.1} parent=5 // pred_check
        _
      $region22: #{tpu_custom_call.1} parent=5 // pred_check_branch
        %113 = sbr.rel (%p110) target = $region24
      $region23: #{tpu_custom_call.1} parent=5 // pred_region
        %s114 = ssub.s32 %s10, 1
        %s115 = smul.u32 2, %s20
        %p116 = scmp.lt.s32.totalorder %s19, 1
        %s117 = scalar_select %p116, %s19, 1
        %p118 = scmp.lt.s32.totalorder %s115, 1
        %s119 = scalar_select %p118, %s115, 1
        %s120 = smul.addr %s117, 2
        %s121 = sadd.s32 %s119, %s120
        %s122 = smul.addr %s121, 4
        %s123 = scalar_lea.vmem %s0, %s122
        %p124 = pneg %p50
        %p125 = pneg %p47
        %p126 = pneg %p76
        %p127 = pneg %p73
        %s128 = sand.u32 %s63, 1
        %s129 = scalar_lea.sflag [#allocation4], %s128
        %s130 = sand.u32 %s63, 1
        %s131 = smul.addr %s130, 192
        %s132 = scalar_lea.vmem [#allocation3], %s131
        %s133 = smul.u32 2, %s20
        %p134 = scmp.lt.s32.totalorder %s19, 1
        %s135 = scalar_select %p134, %s19, 1
        %p136 = scmp.lt.s32.totalorder %s133, 1
        %s137 = scalar_select %p136, %s133, 1
        %s138 = smul.addr %s135, 2
        %s139 = sadd.s32 %s137, %s138
        %s140 = smul.addr %s139, 4
        %s141 = scalar_lea.vmem %s0, %s140
        %s142 = smul.u32 2, %s20
        %p143 = scmp.eq.s32.totalorder %s20, 0
        // Predicated region
        $region25: #{tpu_custom_call.1} parent=23 // pred_check
          %p144 = pneg %p143
        $region26: #{tpu_custom_call.1} parent=23 // pred_check_branch
          %146 = sbr.rel (%p144) target = $region28
        $region27: #{tpu_custom_call.1} parent=23 // pred_region
          %vm147 = vcmask 523264
          %148 = vst.msk [vmem:[#allocation2] sm:$0xff] %vm147, 0.0
          %149 = vst.msk [vmem:[#allocation2 + $0x8] sm:$0xff] %vm147, 0.0
          %150 = vst.msk [vmem:[#allocation2 + $0x10] sm:$0xff] %vm147, 0.0
          %151 = vst.msk [vmem:[#allocation2 + $0x18] sm:$0xff] %vm147, 0.0
          %152 = vst.msk [vmem:[#allocation2 + $0x20] sm:$0xff] %vm147, 0.0
          %153 = vst.msk [vmem:[#allocation2 + $0x28] sm:$0xff] %vm147, 0.0
          %154 = vst.msk [vmem:[#allocation2 + $0x30] sm:$0xff] %vm147, 0.0
          %155 = vst.msk [vmem:[#allocation2 + $0x38] sm:$0xff] %vm147, 0.0
          %156 = vst.msk [vmem:[#allocation2 + $0x40] sm:$0xff] %vm147, 0.0
          %157 = vst.msk [vmem:[#allocation2 + $0x48] sm:$0xff] %vm147, 0.0
          %158 = vst.msk [vmem:[#allocation2 + $0x50] sm:$0xff] %vm147, 0.0
          %159 = vst.msk [vmem:[#allocation2 + $0x58] sm:$0xff] %vm147, 0.0
          %160 = vst.msk [vmem:[#allocation2 + $0x60] sm:$0xff] %vm147, 0.0
          %161 = vst.msk [vmem:[#allocation2 + $0x68] sm:$0xff] %vm147, 0.0
          %162 = vst.msk [vmem:[#allocation2 + $0x70] sm:$0xff] %vm147, 0.0
          %163 = vst.msk [vmem:[#allocation2 + $0x78] sm:$0xff] %vm147, 0.0
          %164 = vst.msk [vmem:[#allocation2 + $0x80] sm:$0xff] %vm147, 0.0
          %165 = vst.msk [vmem:[#allocation2 + $0x88] sm:$0xff] %vm147, 0.0
          %166 = vst.msk [vmem:[#allocation2 + $0x90] sm:$0xff] %vm147, 0.0
          %167 = vst.msk [vmem:[#allocation2 + $0x98] sm:$0xff] %vm147, 0.0
          %168 = vst.msk [vmem:[#allocation2 + $0xa0] sm:$0xff] %vm147, 0.0
          %169 = vst.msk [vmem:[#allocation2 + $0xa8] sm:$0xff] %vm147, 0.0
          %170 = vst.msk [vmem:[#allocation2 + $0xb0] sm:$0xff] %vm147, 0.0
          %171 = vst.msk [vmem:[#allocation2 + $0xb8] sm:$0xff] %vm147, 0.0
        $region28: #{tpu_custom_call.1} parent=23 // pred_fallthru
          _
        %v172 = vld [vmem:[%s141] sm:$0x77]
        %v173 = vlaneseq
        %v174 = vand.u32 %v173, 127
        %v175 = vadd.s32 %v174, 128
        %s176 = smul.u32 %s20, 256
        %v177 = vstv %s176
        %v178 = vadd.s32 %v177, %v174
        %v179 = vadd.s32 %v177, %v175
        %vm180 = vcmp.lt.s32.totalorder %v178, 256
        %vm181 = vcmp.lt.s32.totalorder %v179, 256
        %v182 = vsel %vm180, 1, 0
        %v183 = vsel %vm181, 1, 0
        %v184 = vcvt.s32.f32 %v182
        %v185 = vcvt.s32.f32 %v183
        %v186 = vadd.f32 %v172, 1e-06
        %v187 = vlog2.pop %v186
        %v188 = vmul.f32 %v187, 0.6931472
        %v189 = vmul.f32 %v172, %v172
        %v191 = vrot.slane %v189, 5
        %v192 = vrot.slane %v191, 4
        %v194 = vadd.f32 %v189, %v192
        %v195 = vrot.slane %v189, 6
        %v196 = vrot.slane %v195, 4
        %v198 = vadd.f32 %v194, %v196
        %v199 = vadd.f32 %v198, 1e-06
        %v200 = vrsqrt.pop %v199
        %v201 = vmul.f32 %v200, %v199
        %v202 = vmul.f32 %v201, %v200
        %v203 = vmul.f32 0.5, %v202
        %v204 = vsub.f32 1.5, %v203
        %v205 = vmul.f32 %v200, %v204
        %v206 = vmul.f32 %v199, %v205
        %vm207 = vcmp.eq.f32.partialorder %v199, inf
        %v208 = vsel %vm207, %v199, %v206
        %vm209 = vcmp.eq.f32.partialorder %v199, 0.0
        %v210 = vand.u32 %v199, 2147483648
        %v211 = vsel %vm209, %v210, %v208
        %v214 = vrot.slane %v185, 4
        %vm215 = vcmask 1043456
        %v216 = vsel %vm215, %v184, %v214
        %v218 = vmul.f32 %v211, %v216
        %v219 = vlaneseq
        %v220 = vshrl.u32 %v219, 7
        %v221 = vadd.s32 %v220, 8
        %v222 = vadd.s32 %v220, 16
        %v223 = vadd.s32 %v220, 24
        %v224 = vadd.s32 %v220, 32
        %v225 = vadd.s32 %v220, 40
        %v226 = vadd.s32 %v220, 48
        %v227 = vadd.s32 %v220, 56
        %v228 = vcvt.s32.f32 %v220
        %v229 = vcvt.s32.f32 %v221
        %v230 = vcvt.s32.f32 %v222
        %v231 = vcvt.s32.f32 %v223
        %v232 = vcvt.s32.f32 %v224
        %v233 = vcvt.s32.f32 %v225
        %v234 = vcvt.s32.f32 %v226
        %v235 = vcvt.s32.f32 %v227
        %v236 = vmul.f32 %v228, 0.0952381
        %v237 = vmul.f32 %v229, 0.0952381
        %v238 = vmul.f32 %v230, 0.0952381
        %v239 = vmul.f32 %v231, 0.0952381
        %v240 = vmul.f32 %v232, 0.0952381
        %v241 = vmul.f32 %v233, 0.0952381
        %v242 = vmul.f32 %v234, 0.0952381
        %v243 = vmul.f32 %v235, 0.0952381
        %v244 = vsub.f32 %v236, 3.0
        %v245 = vsub.f32 %v237, 3.0
        %v246 = vsub.f32 %v238, 3.0
        %v247 = vsub.f32 %v239, 3.0
        %v248 = vsub.f32 %v240, 3.0
        %v249 = vsub.f32 %v241, 3.0
        %v250 = vsub.f32 %v242, 3.0
        %v251 = vsub.f32 %v243, 3.0
        %v253 = vrot.slane %v188, 5
        %v254 = vrot.slane %v253, 4
        %v256 = vsub.f32 %v188, %v254
        %v258 = vperm.slane %v256, 0
        %v259 = vperm.slane %v256, 4
        %v262 = vperm.slane %v258, 0
        %v263 = vperm.slane %v259, 0
        %v264 = vsub.f32 %v262, %v244
        %v265 = vsub.f32 %v263, %v244
        %v266 = vsub.f32 %v262, %v245
        %v267 = vsub.f32 %v263, %v245
        %v268 = vsub.f32 %v262, %v246
        %v269 = vsub.f32 %v263, %v246
        %v270 = vsub.f32 %v262, %v247
        %v271 = vsub.f32 %v263, %v247
        %v272 = vsub.f32 %v262, %v248
        %v273 = vsub.f32 %v263, %v248
        %v274 = vsub.f32 %v262, %v249
        %v275 = vsub.f32 %v263, %v249
        %v276 = vsub.f32 %v262, %v250
        %v277 = vsub.f32 %v263, %v250
        %v278 = vsub.f32 %v262, %v251
        %v279 = vsub.f32 %v263, %v251
        %v280 = vand.u32 2147483647, %v264
        %v281 = vand.u32 2147483647, %v265
        %v282 = vand.u32 2147483647, %v266
        %v283 = vand.u32 2147483647, %v267
        %v284 = vand.u32 2147483647, %v268
        %v285 = vand.u32 2147483647, %v269
        %v286 = vand.u32 2147483647, %v270
        %v287 = vand.u32 2147483647, %v271
        %v288 = vand.u32 2147483647, %v272
        %v289 = vand.u32 2147483647, %v273
        %v290 = vand.u32 2147483647, %v274
        %v291 = vand.u32 2147483647, %v275
        %v292 = vand.u32 2147483647, %v276
        %v293 = vand.u32 2147483647, %v277
        %v294 = vand.u32 2147483647, %v278
        %v295 = vand.u32 2147483647, %v279
        %v296 = vmul.f32 %v280, %v280
        %v297 = vmul.f32 %v281, %v281
        %v298 = vmul.f32 %v282, %v282
        %v299 = vmul.f32 %v283, %v283
        %v300 = vmul.f32 %v284, %v284
        %v301 = vmul.f32 %v285, %v285
        %v302 = vmul.f32 %v286, %v286
        %v303 = vmul.f32 %v287, %v287
        %v304 = vmul.f32 %v288, %v288
        %v305 = vmul.f32 %v289, %v289
        %v306 = vmul.f32 %v290, %v290
        %v307 = vmul.f32 %v291, %v291
        %v308 = vmul.f32 %v292, %v292
        %v309 = vmul.f32 %v293, %v293
        %v310 = vmul.f32 %v294, %v294
        %v311 = vmul.f32 %v295, %v295
        %v312 = vmul.f32 %v296, 2500.0
        %v313 = vmul.f32 %v297, 2500.0
        %v314 = vmul.f32 %v298, 2500.0
        %v315 = vmul.f32 %v299, 2500.0
        %v316 = vmul.f32 %v300, 2500.0
        %v317 = vmul.f32 %v301, 2500.0
        %v318 = vmul.f32 %v302, 2500.0
        %v319 = vmul.f32 %v303, 2500.0
        %v320 = vmul.f32 %v304, 2500.0
        %v321 = vmul.f32 %v305, 2500.0
        %v322 = vmul.f32 %v306, 2500.0
        %v323 = vmul.f32 %v307, 2500.0
        %v324 = vmul.f32 %v308, 2500.0
        %v325 = vmul.f32 %v309, 2500.0
        %v326 = vmul.f32 %v310, 2500.0
        %v327 = vmul.f32 %v311, 2500.0
        %v328 = vadd.f32 %v312, 1.0
        %v329 = vadd.f32 %v313, 1.0
        %v330 = vadd.f32 %v314, 1.0
        %v331 = vadd.f32 %v315, 1.0
        %v332 = vadd.f32 %v316, 1.0
        %v333 = vadd.f32 %v317, 1.0
        %v334 = vadd.f32 %v318, 1.0
        %v335 = vadd.f32 %v319, 1.0
        %v336 = vadd.f32 %v320, 1.0
        %v337 = vadd.f32 %v321, 1.0
        %v338 = vadd.f32 %v322, 1.0
        %v339 = vadd.f32 %v323, 1.0
        %v340 = vadd.f32 %v324, 1.0
        %v341 = vadd.f32 %v325, 1.0
        %v342 = vadd.f32 %v326, 1.0
        %v343 = vadd.f32 %v327, 1.0
        %v344 = vrcp.pop %v328
        %v345 = vrcp.pop %v329
        %v346 = vrcp.pop %v330
        %v347 = vrcp.pop %v331
        %v348 = vrcp.pop %v332
        %v349 = vrcp.pop %v333
        %v350 = vrcp.pop %v334
        %v351 = vrcp.pop %v335
        %v352 = vrcp.pop %v336
        %v353 = vrcp.pop %v337
        %v354 = vrcp.pop %v338
        %v355 = vrcp.pop %v339
        %v356 = vrcp.pop %v340
        %v357 = vrcp.pop %v341
        %v358 = vrcp.pop %v342
        %v359 = vrcp.pop %v343
        %v360 = vrot.slane %v188, 6
        %v361 = vrot.slane %v360, 4
        %v363 = vsub.f32 %v188, %v361
        %v365 = vperm.slane %v363, 0
        %v366 = vperm.slane %v363, 4
        %v369 = vperm.slane %v365, 0
        %v370 = vperm.slane %v366, 0
        %v371 = vsub.f32 %v369, %v244
        %v372 = vsub.f32 %v370, %v244
        %v373 = vsub.f32 %v369, %v245
        %v374 = vsub.f32 %v370, %v245
        %v375 = vsub.f32 %v369, %v246
        %v376 = vsub.f32 %v370, %v246
        %v377 = vsub.f32 %v369, %v247
        %v378 = vsub.f32 %v370, %v247
        %v379 = vsub.f32 %v369, %v248
        %v380 = vsub.f32 %v370, %v248
        %v381 = vsub.f32 %v369, %v249
        %v382 = vsub.f32 %v370, %v249
        %v383 = vsub.f32 %v369, %v250
        %v384 = vsub.f32 %v370, %v250
        %v385 = vsub.f32 %v369, %v251
        %v386 = vsub.f32 %v370, %v251
        %v387 = vand.u32 2147483647, %v371
        %v388 = vand.u32 2147483647, %v372
        %v389 = vand.u32 2147483647, %v373
        %v390 = vand.u32 2147483647, %v374
        %v391 = vand.u32 2147483647, %v375
        %v392 = vand.u32 2147483647, %v376
        %v393 = vand.u32 2147483647, %v377
        %v394 = vand.u32 2147483647, %v378
        %v395 = vand.u32 2147483647, %v379
        %v396 = vand.u32 2147483647, %v380
        %v397 = vand.u32 2147483647, %v381
        %v398 = vand.u32 2147483647, %v382
        %v399 = vand.u32 2147483647, %v383
        %v400 = vand.u32 2147483647, %v384
        %v401 = vand.u32 2147483647, %v385
        %v402 = vand.u32 2147483647, %v386
        %v403 = vmul.f32 %v387, %v387
        %v404 = vmul.f32 %v388, %v388
        %v405 = vmul.f32 %v389, %v389
        %v406 = vmul.f32 %v390, %v390
        %v407 = vmul.f32 %v391, %v391
        %v408 = vmul.f32 %v392, %v392
        %v409 = vmul.f32 %v393, %v393
        %v410 = vmul.f32 %v394, %v394
        %v411 = vmul.f32 %v395, %v395
        %v412 = vmul.f32 %v396, %v396
        %v413 = vmul.f32 %v397, %v397
        %v414 = vmul.f32 %v398, %v398
        %v415 = vmul.f32 %v399, %v399
        %v416 = vmul.f32 %v400, %v400
        %v417 = vmul.f32 %v401, %v401
        %v418 = vmul.f32 %v402, %v402
        %v419 = vmul.f32 %v403, 2500.0
        %v420 = vmul.f32 %v404, 2500.0
        %v421 = vmul.f32 %v405, 2500.0
        %v422 = vmul.f32 %v406, 2500.0
        %v423 = vmul.f32 %v407, 2500.0
        %v424 = vmul.f32 %v408, 2500.0
        %v425 = vmul.f32 %v409, 2500.0
        %v426 = vmul.f32 %v410, 2500.0
        %v427 = vmul.f32 %v411, 2500.0
        %v428 = vmul.f32 %v412, 2500.0
        %v429 = vmul.f32 %v413, 2500.0
        %v430 = vmul.f32 %v414, 2500.0
        %v431 = vmul.f32 %v415, 2500.0
        %v432 = vmul.f32 %v416, 2500.0
        %v433 = vmul.f32 %v417, 2500.0
        %v434 = vmul.f32 %v418, 2500.0
        %v435 = vadd.f32 %v419, 1.0
        %v436 = vadd.f32 %v420, 1.0
        %v437 = vadd.f32 %v421, 1.0
        %v438 = vadd.f32 %v422, 1.0
        %v439 = vadd.f32 %v423, 1.0
        %v440 = vadd.f32 %v424, 1.0
        %v441 = vadd.f32 %v425, 1.0
        %v442 = vadd.f32 %v426, 1.0
        %v443 = vadd.f32 %v427, 1.0
        %v444 = vadd.f32 %v428, 1.0
        %v445 = vadd.f32 %v429, 1.0
        %v446 = vadd.f32 %v430, 1.0
        %v447 = vadd.f32 %v431, 1.0
        %v448 = vadd.f32 %v432, 1.0
        %v449 = vadd.f32 %v433, 1.0
        %v450 = vadd.f32 %v434, 1.0
        %v451 = vrcp.pop %v435
        %v452 = vrcp.pop %v436
        %v453 = vrcp.pop %v437
        %v454 = vrcp.pop %v438
        %v455 = vrcp.pop %v439
        %v456 = vrcp.pop %v440
        %v457 = vrcp.pop %v441
        %v458 = vrcp.pop %v442
        %v459 = vrcp.pop %v443
        %v460 = vrcp.pop %v444
        %v461 = vrcp.pop %v445
        %v462 = vrcp.pop %v446
        %v463 = vrcp.pop %v447
        %v464 = vrcp.pop %v448
        %v465 = vrcp.pop %v449
        %v466 = vrcp.pop %v450
        %v468 = vperm.slane %v218, 0
        %v469 = vperm.slane %v218, 4
        %v472 = vperm.slane %v468, 0
        %v473 = vperm.slane %v469, 0
        %v474 = vmul.f32 %v472, %v344
        %v475 = vmul.f32 %v473, %v345
        %v476 = vmul.f32 %v472, %v346
        %v477 = vmul.f32 %v473, %v347
        %v478 = vmul.f32 %v472, %v348
        %v479 = vmul.f32 %v473, %v349
        %v480 = vmul.f32 %v472, %v350
        %v481 = vmul.f32 %v473, %v351
        %v482 = vmul.f32 %v472, %v352
        %v483 = vmul.f32 %v473, %v353
        %v484 = vmul.f32 %v472, %v354
        %v485 = vmul.f32 %v473, %v355
        %v486 = vmul.f32 %v472, %v356
        %v487 = vmul.f32 %v473, %v357
        %v488 = vmul.f32 %v472, %v358
        %v489 = vmul.f32 %v473, %v359
        %490 = vmatpush.xpose.msra.mxu0 0.0
        %491 = vmatpush.xpose.msra.mxu0 0.0
        %492 = vmatpush.xpose.msra.mxu0 0.0
        %493 = vmatpush.xpose.msra.mxu0 0.0
        %494 = vmatpush.xpose.msra.mxu0 0.0
        %495 = vmatpush.xpose.msra.mxu0 0.0
        %496 = vmatpush.xpose.msra.mxu0 0.0
        %497 = vmatpush.xpose.msra.mxu0 0.0
        %498 = vmatpush.xpose.msra.mxu0 %v465
        %499 = vmatpush.xpose.msra.mxu0 %v463
        %500 = vmatpush.xpose.msra.mxu0 %v461
        %501 = vmatpush.xpose.msra.mxu0 %v459
        %502 = vmatpush.xpose.msra.mxu0 %v457
        %503 = vmatpush.xpose.msra.mxu0 %v455
        %504 = vmatpush.xpose.msra.mxu0 %v453
        %505 = vmatpush.xpose.msra.mxu0 %v451
        %506 = vmatmul.f32.gmra.mxu0 %v474
        %v507 = vpop.f32.mrf.mxu0
        %v508 = vadd.f32 0.0, %v507
        %509 = vmatmul.f32.gmra.mxu0 %v476
        %v510 = vpop.f32.mrf.mxu0
        %v511 = vadd.f32 0.0, %v510
        %512 = vmatmul.f32.gmra.mxu0 %v478
        %v513 = vpop.f32.mrf.mxu0
        %v514 = vadd.f32 0.0, %v513
        %515 = vmatmul.f32.gmra.mxu0 %v480
        %v516 = vpop.f32.mrf.mxu0
        %v517 = vadd.f32 0.0, %v516
        %518 = vmatmul.f32.gmra.mxu0 %v482
        %v519 = vpop.f32.mrf.mxu0
        %v520 = vadd.f32 0.0, %v519
        %521 = vmatmul.f32.gmra.mxu0 %v484
        %v522 = vpop.f32.mrf.mxu0
        %v523 = vadd.f32 0.0, %v522
        %524 = vmatmul.f32.gmra.mxu0 %v486
        %v525 = vpop.f32.mrf.mxu0
        %v526 = vadd.f32 0.0, %v525
        %527 = vmatmul.f32.gmra.mxu0 %v488
        %v528 = vpop.f32.mrf.mxu0
        %v529 = vadd.f32 0.0, %v528
        %530 = vdwg.mxu0
        %531 = vmatpush.xpose.msra.mxu0 0.0
        %532 = vmatpush.xpose.msra.mxu0 0.0
        %533 = vmatpush.xpose.msra.mxu0 0.0
        %534 = vmatpush.xpose.msra.mxu0 0.0
        %535 = vmatpush.xpose.msra.mxu0 0.0
        %536 = vmatpush.xpose.msra.mxu0 0.0
        %537 = vmatpush.xpose.msra.mxu0 0.0
        %538 = vmatpush.xpose.msra.mxu0 0.0
        %539 = vmatpush.xpose.msra.mxu0 %v466
        %540 = vmatpush.xpose.msra.mxu0 %v464
        %541 = vmatpush.xpose.msra.mxu0 %v462
        %542 = vmatpush.xpose.msra.mxu0 %v460
        %543 = vmatpush.xpose.msra.mxu0 %v458
        %544 = vmatpush.xpose.msra.mxu0 %v456
        %545 = vmatpush.xpose.msra.mxu0 %v454
        %546 = vmatpush.xpose.msra.mxu0 %v452
        %547 = vmatmul.f32.gmra.mxu0 %v475
        %v548 = vpop.f32.mrf.mxu0
        %v549 = vadd.f32 %v508, %v548
        %550 = vmatmul.f32.gmra.mxu0 %v477
        %v551 = vpop.f32.mrf.mxu0
        %v552 = vadd.f32 %v511, %v551
        %553 = vmatmul.f32.gmra.mxu0 %v479
        %v554 = vpop.f32.mrf.mxu0
        %v555 = vadd.f32 %v514, %v554
        %556 = vmatmul.f32.gmra.mxu0 %v481
        %v557 = vpop.f32.mrf.mxu0
        %v558 = vadd.f32 %v517, %v557
        %559 = vmatmul.f32.gmra.mxu0 %v483
        %v560 = vpop.f32.mrf.mxu0
        %v561 = vadd.f32 %v520, %v560
        %562 = vmatmul.f32.gmra.mxu0 %v485
        %v563 = vpop.f32.mrf.mxu0
        %v564 = vadd.f32 %v523, %v563
        %565 = vmatmul.f32.gmra.mxu0 %v487
        %v566 = vpop.f32.mrf.mxu0
        %v567 = vadd.f32 %v526, %v566
        %568 = vmatmul.f32.gmra.mxu0 %v489
        %v569 = vpop.f32.mrf.mxu0
        %v570 = vadd.f32 %v529, %v569
        %571 = vdwg.mxu0
        %v572 = vld [vmem:[#allocation2] sm:$0xff]
        %v573 = vld [vmem:[#allocation2 + $0x8] sm:$0xff]
        %v574 = vld [vmem:[#allocation2 + $0x10] sm:$0xff]
        %v575 = vld [vmem:[#allocation2 + $0x18] sm:$0xff]
        %v576 = vld [vmem:[#allocation2 + $0x20] sm:$0xff]
        %v577 = vld [vmem:[#allocation2 + $0x28] sm:$0xff]
        %v578 = vld [vmem:[#allocation2 + $0x30] sm:$0xff]
        %v579 = vld [vmem:[#allocation2 + $0x38] sm:$0xff]
        %v580 = vadd.f32 %v572, %v549
        %v581 = vadd.f32 %v573, %v552
        %v582 = vadd.f32 %v574, %v555
        %v583 = vadd.f32 %v575, %v558
        %v584 = vadd.f32 %v576, %v561
        %v585 = vadd.f32 %v577, %v564
        %v586 = vadd.f32 %v578, %v567
        %v587 = vadd.f32 %v579, %v570
        %vm588 = vcmask 523264
        %589 = vst.msk [vmem:[#allocation2] sm:$0xff] %vm588, %v580
        %590 = vst.msk [vmem:[#allocation2 + $0x8] sm:$0xff] %vm588, %v581
        %591 = vst.msk [vmem:[#allocation2 + $0x10] sm:$0xff] %vm588, %v582
        %592 = vst.msk [vmem:[#allocation2 + $0x18] sm:$0xff] %vm588, %v583
        %593 = vst.msk [vmem:[#allocation2 + $0x20] sm:$0xff] %vm588, %v584
        %594 = vst.msk [vmem:[#allocation2 + $0x28] sm:$0xff] %vm588, %v585
        %595 = vst.msk [vmem:[#allocation2 + $0x30] sm:$0xff] %vm588, %v586
        %596 = vst.msk [vmem:[#allocation2 + $0x38] sm:$0xff] %vm588, %v587
        %v597 = vrot.slane %v188, 7
        %v599 = vsub.f32 %v188, %v597
        %v601 = vperm.slane %v599, 1
        %v602 = vperm.slane %v599, 5
        %v605 = vperm.slane %v601, 1
        %v606 = vperm.slane %v602, 1
        %v607 = vsub.f32 %v605, %v244
        %v608 = vsub.f32 %v606, %v244
        %v609 = vsub.f32 %v605, %v245
        %v610 = vsub.f32 %v606, %v245
        %v611 = vsub.f32 %v605, %v246
        %v612 = vsub.f32 %v606, %v246
        %v613 = vsub.f32 %v605, %v247
        %v614 = vsub.f32 %v606, %v247
        %v615 = vsub.f32 %v605, %v248
        %v616 = vsub.f32 %v606, %v248
        %v617 = vsub.f32 %v605, %v249
        %v618 = vsub.f32 %v606, %v249
        %v619 = vsub.f32 %v605, %v250
        %v620 = vsub.f32 %v606, %v250
        %v621 = vsub.f32 %v605, %v251
        %v622 = vsub.f32 %v606, %v251
        %v623 = vand.u32 2147483647, %v607
        %v624 = vand.u32 2147483647, %v608
        %v625 = vand.u32 2147483647, %v609
        %v626 = vand.u32 2147483647, %v610
        %v627 = vand.u32 2147483647, %v611
        %v628 = vand.u32 2147483647, %v612
        %v629 = vand.u32 2147483647, %v613
        %v630 = vand.u32 2147483647, %v614
        %v631 = vand.u32 2147483647, %v615
        %v632 = vand.u32 2147483647, %v616
        %v633 = vand.u32 2147483647, %v617
        %v634 = vand.u32 2147483647, %v618
        %v635 = vand.u32 2147483647, %v619
        %v636 = vand.u32 2147483647, %v620
        %v637 = vand.u32 2147483647, %v621
        %v638 = vand.u32 2147483647, %v622
        %v639 = vmul.f32 %v623, %v623
        %v640 = vmul.f32 %v624, %v624
        %v641 = vmul.f32 %v625, %v625
        %v642 = vmul.f32 %v626, %v626
        %v643 = vmul.f32 %v627, %v627
        %v644 = vmul.f32 %v628, %v628
        %v645 = vmul.f32 %v629, %v629
        %v646 = vmul.f32 %v630, %v630
        %v647 = vmul.f32 %v631, %v631
        %v648 = vmul.f32 %v632, %v632
        %v649 = vmul.f32 %v633, %v633
        %v650 = vmul.f32 %v634, %v634
        %v651 = vmul.f32 %v635, %v635
        %v652 = vmul.f32 %v636, %v636
        %v653 = vmul.f32 %v637, %v637
        %v654 = vmul.f32 %v638, %v638
        %v655 = vmul.f32 %v639, 2500.0
        %v656 = vmul.f32 %v640, 2500.0
        %v657 = vmul.f32 %v641, 2500.0
        %v658 = vmul.f32 %v642, 2500.0
        %v659 = vmul.f32 %v643, 2500.0
        %v660 = vmul.f32 %v644, 2500.0
        %v661 = vmul.f32 %v645, 2500.0
        %v662 = vmul.f32 %v646, 2500.0
        %v663 = vmul.f32 %v647, 2500.0
        %v664 = vmul.f32 %v648, 2500.0
        %v665 = vmul.f32 %v649, 2500.0
        %v666 = vmul.f32 %v650, 2500.0
        %v667 = vmul.f32 %v651, 2500.0
        %v668 = vmul.f32 %v652, 2500.0
        %v669 = vmul.f32 %v653, 2500.0
        %v670 = vmul.f32 %v654, 2500.0
        %v671 = vadd.f32 %v655, 1.0
        %v672 = vadd.f32 %v656, 1.0
        %v673 = vadd.f32 %v657, 1.0
        %v674 = vadd.f32 %v658, 1.0
        %v675 = vadd.f32 %v659, 1.0
        %v676 = vadd.f32 %v660, 1.0
        %v677 = vadd.f32 %v661, 1.0
        %v678 = vadd.f32 %v662, 1.0
        %v679 = vadd.f32 %v663, 1.0
        %v680 = vadd.f32 %v664, 1.0
        %v681 = vadd.f32 %v665, 1.0
        %v682 = vadd.f32 %v666, 1.0
        %v683 = vadd.f32 %v667, 1.0
        %v684 = vadd.f32 %v668, 1.0
        %v685 = vadd.f32 %v669, 1.0
        %v686 = vadd.f32 %v670, 1.0
        %v687 = vrcp.pop %v671
        %v688 = vrcp.pop %v672
        %v689 = vrcp.pop %v673
        %v690 = vrcp.pop %v674
        %v691 = vrcp.pop %v675
        %v692 = vrcp.pop %v676
        %v693 = vrcp.pop %v677
        %v694 = vrcp.pop %v678
        %v695 = vrcp.pop %v679
        %v696 = vrcp.pop %v680
        %v697 = vrcp.pop %v681
        %v698 = vrcp.pop %v682
        %v699 = vrcp.pop %v683
        %v700 = vrcp.pop %v684
        %v701 = vrcp.pop %v685
        %v702 = vrcp.pop %v686
        %v703 = vperm.slane %v256, 1
        %v704 = vperm.slane %v256, 5
        %v707 = vperm.slane %v703, 1
        %v708 = vperm.slane %v704, 1
        %v709 = vsub.f32 %v707, %v244
        %v710 = vsub.f32 %v708, %v244
        %v711 = vsub.f32 %v707, %v245
        %v712 = vsub.f32 %v708, %v245
        %v713 = vsub.f32 %v707, %v246
        %v714 = vsub.f32 %v708, %v246
        %v715 = vsub.f32 %v707, %v247
        %v716 = vsub.f32 %v708, %v247
        %v717 = vsub.f32 %v707, %v248
        %v718 = vsub.f32 %v708, %v248
        %v719 = vsub.f32 %v707, %v249
        %v720 = vsub.f32 %v708, %v249
        %v721 = vsub.f32 %v707, %v250
        %v722 = vsub.f32 %v708, %v250
        %v723 = vsub.f32 %v707, %v251
        %v724 = vsub.f32 %v708, %v251
        %v725 = vand.u32 2147483647, %v709
        %v726 = vand.u32 2147483647, %v710
        %v727 = vand.u32 2147483647, %v711
        %v728 = vand.u32 2147483647, %v712
        %v729 = vand.u32 2147483647, %v713
        %v730 = vand.u32 2147483647, %v714
        %v731 = vand.u32 2147483647, %v715
        %v732 = vand.u32 2147483647, %v716
        %v733 = vand.u32 2147483647, %v717
        %v734 = vand.u32 2147483647, %v718
        %v735 = vand.u32 2147483647, %v719
        %v736 = vand.u32 2147483647, %v720
        %v737 = vand.u32 2147483647, %v721
        %v738 = vand.u32 2147483647, %v722
        %v739 = vand.u32 2147483647, %v723
        %v740 = vand.u32 2147483647, %v724
        %v741 = vmul.f32 %v725, %v725
        %v742 = vmul.f32 %v726, %v726
        %v743 = vmul.f32 %v727, %v727
        %v744 = vmul.f32 %v728, %v728
        %v745 = vmul.f32 %v729, %v729
        %v746 = vmul.f32 %v730, %v730
        %v747 = vmul.f32 %v731, %v731
        %v748 = vmul.f32 %v732, %v732
        %v749 = vmul.f32 %v733, %v733
        %v750 = vmul.f32 %v734, %v734
        %v751 = vmul.f32 %v735, %v735
        %v752 = vmul.f32 %v736, %v736
        %v753 = vmul.f32 %v737, %v737
        %v754 = vmul.f32 %v738, %v738
        %v755 = vmul.f32 %v739, %v739
        %v756 = vmul.f32 %v740, %v740
        %v757 = vmul.f32 %v741, 2500.0
        %v758 = vmul.f32 %v742, 2500.0
        %v759 = vmul.f32 %v743, 2500.0
        %v760 = vmul.f32 %v744, 2500.0
        %v761 = vmul.f32 %v745, 2500.0
        %v762 = vmul.f32 %v746, 2500.0
        %v763 = vmul.f32 %v747, 2500.0
        %v764 = vmul.f32 %v748, 2500.0
        %v765 = vmul.f32 %v749, 2500.0
        %v766 = vmul.f32 %v750, 2500.0
        %v767 = vmul.f32 %v751, 2500.0
        %v768 = vmul.f32 %v752, 2500.0
        %v769 = vmul.f32 %v753, 2500.0
        %v770 = vmul.f32 %v754, 2500.0
        %v771 = vmul.f32 %v755, 2500.0
        %v772 = vmul.f32 %v756, 2500.0
        %v773 = vadd.f32 %v757, 1.0
        %v774 = vadd.f32 %v758, 1.0
        %v775 = vadd.f32 %v759, 1.0
        %v776 = vadd.f32 %v760, 1.0
        %v777 = vadd.f32 %v761, 1.0
        %v778 = vadd.f32 %v762, 1.0
        %v779 = vadd.f32 %v763, 1.0
        %v780 = vadd.f32 %v764, 1.0
        %v781 = vadd.f32 %v765, 1.0
        %v782 = vadd.f32 %v766, 1.0
        %v783 = vadd.f32 %v767, 1.0
        %v784 = vadd.f32 %v768, 1.0
        %v785 = vadd.f32 %v769, 1.0
        %v786 = vadd.f32 %v770, 1.0
        %v787 = vadd.f32 %v771, 1.0
        %v788 = vadd.f32 %v772, 1.0
        %v789 = vrcp.pop %v773
        %v790 = vrcp.pop %v774
        %v791 = vrcp.pop %v775
        %v792 = vrcp.pop %v776
        %v793 = vrcp.pop %v777
        %v794 = vrcp.pop %v778
        %v795 = vrcp.pop %v779
        %v796 = vrcp.pop %v780
        %v797 = vrcp.pop %v781
        %v798 = vrcp.pop %v782
        %v799 = vrcp.pop %v783
        %v800 = vrcp.pop %v784
        %v801 = vrcp.pop %v785
        %v802 = vrcp.pop %v786
        %v803 = vrcp.pop %v787
        %v804 = vrcp.pop %v788
        %v805 = vmul.f32 %v472, %v687
        %v806 = vmul.f32 %v473, %v688
        %v807 = vmul.f32 %v472, %v689
        %v808 = vmul.f32 %v473, %v690
        %v809 = vmul.f32 %v472, %v691
        %v810 = vmul.f32 %v473, %v692
        %v811 = vmul.f32 %v472, %v693
        %v812 = vmul.f32 %v473, %v694
        %v813 = vmul.f32 %v472, %v695
        %v814 = vmul.f32 %v473, %v696
        %v815 = vmul.f32 %v472, %v697
        %v816 = vmul.f32 %v473, %v698
        %v817 = vmul.f32 %v472, %v699
        %v818 = vmul.f32 %v473, %v700
        %v819 = vmul.f32 %v472, %v701
        %v820 = vmul.f32 %v473, %v702
        %821 = vmatpush.xpose.msra.mxu0 0.0
        %822 = vmatpush.xpose.msra.mxu0 0.0
        %823 = vmatpush.xpose.msra.mxu0 0.0
        %824 = vmatpush.xpose.msra.mxu0 0.0
        %825 = vmatpush.xpose.msra.mxu0 0.0
        %826 = vmatpush.xpose.msra.mxu0 0.0
        %827 = vmatpush.xpose.msra.mxu0 0.0
        %828 = vmatpush.xpose.msra.mxu0 0.0
        %829 = vmatpush.xpose.msra.mxu0 %v803
        %830 = vmatpush.xpose.msra.mxu0 %v801
        %831 = vmatpush.xpose.msra.mxu0 %v799
        %832 = vmatpush.xpose.msra.mxu0 %v797
        %833 = vmatpush.xpose.msra.mxu0 %v795
        %834 = vmatpush.xpose.msra.mxu0 %v793
        %835 = vmatpush.xpose.msra.mxu0 %v791
        %836 = vmatpush.xpose.msra.mxu0 %v789
        %837 = vmatmul.f32.gmra.mxu0 %v805
        %v838 = vpop.f32.mrf.mxu0
        %v839 = vadd.f32 0.0, %v838
        %840 = vmatmul.f32.gmra.mxu0 %v807
        %v841 = vpop.f32.mrf.mxu0
        %v842 = vadd.f32 0.0, %v841
        %843 = vmatmul.f32.gmra.mxu0 %v809
        %v844 = vpop.f32.mrf.mxu0
        %v845 = vadd.f32 0.0, %v844
        %846 = vmatmul.f32.gmra.mxu0 %v811
        %v847 = vpop.f32.mrf.mxu0
        %v848 = vadd.f32 0.0, %v847
        %849 = vmatmul.f32.gmra.mxu0 %v813
        %v850 = vpop.f32.mrf.mxu0
        %v851 = vadd.f32 0.0, %v850
        %852 = vmatmul.f32.gmra.mxu0 %v815
        %v853 = vpop.f32.mrf.mxu0
        %v854 = vadd.f32 0.0, %v853
        %855 = vmatmul.f32.gmra.mxu0 %v817
        %v856 = vpop.f32.mrf.mxu0
        %v857 = vadd.f32 0.0, %v856
        %858 = vmatmul.f32.gmra.mxu0 %v819
        %v859 = vpop.f32.mrf.mxu0
        %v860 = vadd.f32 0.0, %v859
        %861 = vdwg.mxu0
        %862 = vmatpush.xpose.msra.mxu0 0.0
        %863 = vmatpush.xpose.msra.mxu0 0.0
        %864 = vmatpush.xpose.msra.mxu0 0.0
        %865 = vmatpush.xpose.msra.mxu0 0.0
        %866 = vmatpush.xpose.msra.mxu0 0.0
        %867 = vmatpush.xpose.msra.mxu0 0.0
        %868 = vmatpush.xpose.msra.mxu0 0.0
        %869 = vmatpush.xpose.msra.mxu0 0.0
        %870 = vmatpush.xpose.msra.mxu0 %v804
        %871 = vmatpush.xpose.msra.mxu0 %v802
        %872 = vmatpush.xpose.msra.mxu0 %v800
        %873 = vmatpush.xpose.msra.mxu0 %v798
        %874 = vmatpush.xpose.msra.mxu0 %v796
        %875 = vmatpush.xpose.msra.mxu0 %v794
        %876 = vmatpush.xpose.msra.mxu0 %v792
        %877 = vmatpush.xpose.msra.mxu0 %v790
        %878 = vmatmul.f32.gmra.mxu0 %v806
        %v879 = vpop.f32.mrf.mxu0
        %v880 = vadd.f32 %v839, %v879
        %881 = vmatmul.f32.gmra.mxu0 %v808
        %v882 = vpop.f32.mrf.mxu0
        %v883 = vadd.f32 %v842, %v882
        %884 = vmatmul.f32.gmra.mxu0 %v810
        %v885 = vpop.f32.mrf.mxu0
        %v886 = vadd.f32 %v845, %v885
        %887 = vmatmul.f32.gmra.mxu0 %v812
        %v888 = vpop.f32.mrf.mxu0
        %v889 = vadd.f32 %v848, %v888
        %890 = vmatmul.f32.gmra.mxu0 %v814
        %v891 = vpop.f32.mrf.mxu0
        %v892 = vadd.f32 %v851, %v891
        %893 = vmatmul.f32.gmra.mxu0 %v816
        %v894 = vpop.f32.mrf.mxu0
        %v895 = vadd.f32 %v854, %v894
        %896 = vmatmul.f32.gmra.mxu0 %v818
        %v897 = vpop.f32.mrf.mxu0
        %v898 = vadd.f32 %v857, %v897
        %899 = vmatmul.f32.gmra.mxu0 %v820
        %v900 = vpop.f32.mrf.mxu0
        %v901 = vadd.f32 %v860, %v900
        %902 = vdwg.mxu0
        %s903 = scalar_lea.vmem [#allocation2], 64
        %v904 = vld [vmem:[%s903] sm:$0xff]
        %v905 = vld [vmem:[%s903 + $0x8] sm:$0xff]
        %v906 = vld [vmem:[%s903 + $0x10] sm:$0xff]
        %v907 = vld [vmem:[%s903 + $0x18] sm:$0xff]
        %v908 = vld [vmem:[%s903 + $0x20] sm:$0xff]
        %v909 = vld [vmem:[%s903 + $0x28] sm:$0xff]
        %v910 = vld [vmem:[%s903 + $0x30] sm:$0xff]
        %v911 = vld [vmem:[%s903 + $0x38] sm:$0xff]
        %v912 = vadd.f32 %v904, %v880
        %v913 = vadd.f32 %v905, %v883
        %v914 = vadd.f32 %v906, %v886
        %v915 = vadd.f32 %v907, %v889
        %v916 = vadd.f32 %v908, %v892
        %v917 = vadd.f32 %v909, %v895
        %v918 = vadd.f32 %v910, %v898
        %v919 = vadd.f32 %v911, %v901
        %920 = vst.msk [vmem:[%s903] sm:$0xff] %vm588, %v912
        %921 = vst.msk [vmem:[%s903 + $0x8] sm:$0xff] %vm588, %v913
        %922 = vst.msk [vmem:[%s903 + $0x10] sm:$0xff] %vm588, %v914
        %923 = vst.msk [vmem:[%s903 + $0x18] sm:$0xff] %vm588, %v915
        %924 = vst.msk [vmem:[%s903 + $0x20] sm:$0xff] %vm588, %v916
        %925 = vst.msk [vmem:[%s903 + $0x28] sm:$0xff] %vm588, %v917
        %926 = vst.msk [vmem:[%s903 + $0x30] sm:$0xff] %vm588, %v918
        %927 = vst.msk [vmem:[%s903 + $0x38] sm:$0xff] %vm588, %v919
        %v929 = vsub.f32 %v188, %v360
        %v931 = vperm.slane %v929, 2
        %v932 = vperm.slane %v929, 6
        %v935 = vperm.slane %v931, 2
        %v936 = vperm.slane %v932, 2
        %v937 = vsub.f32 %v935, %v244
        %v938 = vsub.f32 %v936, %v244
        %v939 = vsub.f32 %v935, %v245
        %v940 = vsub.f32 %v936, %v245
        %v941 = vsub.f32 %v935, %v246
        %v942 = vsub.f32 %v936, %v246
        %v943 = vsub.f32 %v935, %v247
        %v944 = vsub.f32 %v936, %v247
        %v945 = vsub.f32 %v935, %v248
        %v946 = vsub.f32 %v936, %v248
        %v947 = vsub.f32 %v935, %v249
        %v948 = vsub.f32 %v936, %v249
        %v949 = vsub.f32 %v935, %v250
        %v950 = vsub.f32 %v936, %v250
        %v951 = vsub.f32 %v935, %v251
        %v952 = vsub.f32 %v936, %v251
        %v953 = vand.u32 2147483647, %v937
        %v954 = vand.u32 2147483647, %v938
        %v955 = vand.u32 2147483647, %v939
        %v956 = vand.u32 2147483647, %v940
        %v957 = vand.u32 2147483647, %v941
        %v958 = vand.u32 2147483647, %v942
        %v959 = vand.u32 2147483647, %v943
        %v960 = vand.u32 2147483647, %v944
        %v961 = vand.u32 2147483647, %v945
        %v962 = vand.u32 2147483647, %v946
        %v963 = vand.u32 2147483647, %v947
        %v964 = vand.u32 2147483647, %v948
        %v965 = vand.u32 2147483647, %v949
        %v966 = vand.u32 2147483647, %v950
        %v967 = vand.u32 2147483647, %v951
        %v968 = vand.u32 2147483647, %v952
        %v969 = vmul.f32 %v953, %v953
        %v970 = vmul.f32 %v954, %v954
        %v971 = vmul.f32 %v955, %v955
        %v972 = vmul.f32 %v956, %v956
        %v973 = vmul.f32 %v957, %v957
        %v974 = vmul.f32 %v958, %v958
        %v975 = vmul.f32 %v959, %v959
        %v976 = vmul.f32 %v960, %v960
        %v977 = vmul.f32 %v961, %v961
        %v978 = vmul.f32 %v962, %v962
        %v979 = vmul.f32 %v963, %v963
        %v980 = vmul.f32 %v964, %v964
        %v981 = vmul.f32 %v965, %v965
        %v982 = vmul.f32 %v966, %v966
        %v983 = vmul.f32 %v967, %v967
        %v984 = vmul.f32 %v968, %v968
        %v985 = vmul.f32 %v969, 2500.0
        %v986 = vmul.f32 %v970, 2500.0
        %v987 = vmul.f32 %v971, 2500.0
        %v988 = vmul.f32 %v972, 2500.0
        %v989 = vmul.f32 %v973, 2500.0
        %v990 = vmul.f32 %v974, 2500.0
        %v991 = vmul.f32 %v975, 2500.0
        %v992 = vmul.f32 %v976, 2500.0
        %v993 = vmul.f32 %v977, 2500.0
        %v994 = vmul.f32 %v978, 2500.0
        %v995 = vmul.f32 %v979, 2500.0
        %v996 = vmul.f32 %v980, 2500.0
        %v997 = vmul.f32 %v981, 2500.0
        %v998 = vmul.f32 %v982, 2500.0
        %v999 = vmul.f32 %v983, 2500.0
        %v1000 = vmul.f32 %v984, 2500.0
        %v1001 = vadd.f32 %v985, 1.0
        %v1002 = vadd.f32 %v986, 1.0
        %v1003 = vadd.f32 %v987, 1.0
        %v1004 = vadd.f32 %v988, 1.0
        %v1005 = vadd.f32 %v989, 1.0
        %v1006 = vadd.f32 %v990, 1.0
        %v1007 = vadd.f32 %v991, 1.0
        %v1008 = vadd.f32 %v992, 1.0
        %v1009 = vadd.f32 %v993, 1.0
        %v1010 = vadd.f32 %v994, 1.0
        %v1011 = vadd.f32 %v995, 1.0
        %v1012 = vadd.f32 %v996, 1.0
        %v1013 = vadd.f32 %v997, 1.0
        %v1014 = vadd.f32 %v998, 1.0
        %v1015 = vadd.f32 %v999, 1.0
        %v1016 = vadd.f32 %v1000, 1.0
        %v1017 = vrcp.pop %v1001
        %v1018 = vrcp.pop %v1002
        %v1019 = vrcp.pop %v1003
        %v1020 = vrcp.pop %v1004
        %v1021 = vrcp.pop %v1005
        %v1022 = vrcp.pop %v1006
        %v1023 = vrcp.pop %v1007
        %v1024 = vrcp.pop %v1008
        %v1025 = vrcp.pop %v1009
        %v1026 = vrcp.pop %v1010
        %v1027 = vrcp.pop %v1011
        %v1028 = vrcp.pop %v1012
        %v1029 = vrcp.pop %v1013
        %v1030 = vrcp.pop %v1014
        %v1031 = vrcp.pop %v1015
        %v1032 = vrcp.pop %v1016
        %v1033 = vperm.slane %v599, 2
        %v1034 = vperm.slane %v599, 6
        %v1037 = vperm.slane %v1033, 2
        %v1038 = vperm.slane %v1034, 2
        %v1039 = vsub.f32 %v1037, %v244
        %v1040 = vsub.f32 %v1038, %v244
        %v1041 = vsub.f32 %v1037, %v245
        %v1042 = vsub.f32 %v1038, %v245
        %v1043 = vsub.f32 %v1037, %v246
        %v1044 = vsub.f32 %v1038, %v246
        %v1045 = vsub.f32 %v1037, %v247
        %v1046 = vsub.f32 %v1038, %v247
        %v1047 = vsub.f32 %v1037, %v248
        %v1048 = vsub.f32 %v1038, %v248
        %v1049 = vsub.f32 %v1037, %v249
        %v1050 = vsub.f32 %v1038, %v249
        %v1051 = vsub.f32 %v1037, %v250
        %v1052 = vsub.f32 %v1038, %v250
        %v1053 = vsub.f32 %v1037, %v251
        %v1054 = vsub.f32 %v1038, %v251
        %v1055 = vand.u32 2147483647, %v1039
        %v1056 = vand.u32 2147483647, %v1040
        %v1057 = vand.u32 2147483647, %v1041
        %v1058 = vand.u32 2147483647, %v1042
        %v1059 = vand.u32 2147483647, %v1043
        %v1060 = vand.u32 2147483647, %v1044
        %v1061 = vand.u32 2147483647, %v1045
        %v1062 = vand.u32 2147483647, %v1046
        %v1063 = vand.u32 2147483647, %v1047
        %v1064 = vand.u32 2147483647, %v1048
        %v1065 = vand.u32 2147483647, %v1049
        %v1066 = vand.u32 2147483647, %v1050
        %v1067 = vand.u32 2147483647, %v1051
        %v1068 = vand.u32 2147483647, %v1052
        %v1069 = vand.u32 2147483647, %v1053
        %v1070 = vand.u32 2147483647, %v1054
        %v1071 = vmul.f32 %v1055, %v1055
        %v1072 = vmul.f32 %v1056, %v1056
        %v1073 = vmul.f32 %v1057, %v1057
        %v1074 = vmul.f32 %v1058, %v1058
        %v1075 = vmul.f32 %v1059, %v1059
        %v1076 = vmul.f32 %v1060, %v1060
        %v1077 = vmul.f32 %v1061, %v1061
        %v1078 = vmul.f32 %v1062, %v1062
        %v1079 = vmul.f32 %v1063, %v1063
        %v1080 = vmul.f32 %v1064, %v1064
        %v1081 = vmul.f32 %v1065, %v1065
        %v1082 = vmul.f32 %v1066, %v1066
        %v1083 = vmul.f32 %v1067, %v1067
        %v1084 = vmul.f32 %v1068, %v1068
        %v1085 = vmul.f32 %v1069, %v1069
        %v1086 = vmul.f32 %v1070, %v1070
        %v1087 = vmul.f32 %v1071, 2500.0
        %v1088 = vmul.f32 %v1072, 2500.0
        %v1089 = vmul.f32 %v1073, 2500.0
        %v1090 = vmul.f32 %v1074, 2500.0
        %v1091 = vmul.f32 %v1075, 2500.0
        %v1092 = vmul.f32 %v1076, 2500.0
        %v1093 = vmul.f32 %v1077, 2500.0
        %v1094 = vmul.f32 %v1078, 2500.0
        %v1095 = vmul.f32 %v1079, 2500.0
        %v1096 = vmul.f32 %v1080, 2500.0
        %v1097 = vmul.f32 %v1081, 2500.0
        %v1098 = vmul.f32 %v1082, 2500.0
        %v1099 = vmul.f32 %v1083, 2500.0
        %v1100 = vmul.f32 %v1084, 2500.0
        %v1101 = vmul.f32 %v1085, 2500.0
        %v1102 = vmul.f32 %v1086, 2500.0
        %v1103 = vadd.f32 %v1087, 1.0
        %v1104 = vadd.f32 %v1088, 1.0
        %v1105 = vadd.f32 %v1089, 1.0
        %v1106 = vadd.f32 %v1090, 1.0
        %v1107 = vadd.f32 %v1091, 1.0
        %v1108 = vadd.f32 %v1092, 1.0
        %v1109 = vadd.f32 %v1093, 1.0
        %v1110 = vadd.f32 %v1094, 1.0
        %v1111 = vadd.f32 %v1095, 1.0
        %v1112 = vadd.f32 %v1096, 1.0
        %v1113 = vadd.f32 %v1097, 1.0
        %v1114 = vadd.f32 %v1098, 1.0
        %v1115 = vadd.f32 %v1099, 1.0
        %v1116 = vadd.f32 %v1100, 1.0
        %v1117 = vadd.f32 %v1101, 1.0
        %v1118 = vadd.f32 %v1102, 1.0
        %v1119 = vrcp.pop %v1103
        %v1120 = vrcp.pop %v1104
        %v1121 = vrcp.pop %v1105
        %v1122 = vrcp.pop %v1106
        %v1123 = vrcp.pop %v1107
        %v1124 = vrcp.pop %v1108
        %v1125 = vrcp.pop %v1109
        %v1126 = vrcp.pop %v1110
        %v1127 = vrcp.pop %v1111
        %v1128 = vrcp.pop %v1112
        %v1129 = vrcp.pop %v1113
        %v1130 = vrcp.pop %v1114
        %v1131 = vrcp.pop %v1115
        %v1132 = vrcp.pop %v1116
        %v1133 = vrcp.pop %v1117
        %v1134 = vrcp.pop %v1118
        %v1135 = vmul.f32 %v472, %v1017
        %v1136 = vmul.f32 %v473, %v1018
        %v1137 = vmul.f32 %v472, %v1019
        %v1138 = vmul.f32 %v473, %v1020
        %v1139 = vmul.f32 %v472, %v1021
        %v1140 = vmul.f32 %v473, %v1022
        %v1141 = vmul.f32 %v472, %v1023
        %v1142 = vmul.f32 %v473, %v1024
        %v1143 = vmul.f32 %v472, %v1025
        %v1144 = vmul.f32 %v473, %v1026
        %v1145 = vmul.f32 %v472, %v1027
        %v1146 = vmul.f32 %v473, %v1028
        %v1147 = vmul.f32 %v472, %v1029
        %v1148 = vmul.f32 %v473, %v1030
        %v1149 = vmul.f32 %v472, %v1031
        %v1150 = vmul.f32 %v473, %v1032
        %1151 = vmatpush.xpose.msra.mxu0 0.0
        %1152 = vmatpush.xpose.msra.mxu0 0.0
        %1153 = vmatpush.xpose.msra.mxu0 0.0
        %1154 = vmatpush.xpose.msra.mxu0 0.0
        %1155 = vmatpush.xpose.msra.mxu0 0.0
        %1156 = vmatpush.xpose.msra.mxu0 0.0
        %1157 = vmatpush.xpose.msra.mxu0 0.0
        %1158 = vmatpush.xpose.msra.mxu0 0.0
        %1159 = vmatpush.xpose.msra.mxu0 %v1133
        %1160 = vmatpush.xpose.msra.mxu0 %v1131
        %1161 = vmatpush.xpose.msra.mxu0 %v1129
        %1162 = vmatpush.xpose.msra.mxu0 %v1127
        %1163 = vmatpush.xpose.msra.mxu0 %v1125
        %1164 = vmatpush.xpose.msra.mxu0 %v1123
        %1165 = vmatpush.xpose.msra.mxu0 %v1121
        %1166 = vmatpush.xpose.msra.mxu0 %v1119
        %1167 = vmatmul.f32.gmra.mxu0 %v1135
        %v1168 = vpop.f32.mrf.mxu0
        %v1169 = vadd.f32 0.0, %v1168
        %1170 = vmatmul.f32.gmra.mxu0 %v1137
        %v1171 = vpop.f32.mrf.mxu0
        %v1172 = vadd.f32 0.0, %v1171
        %1173 = vmatmul.f32.gmra.mxu0 %v1139
        %v1174 = vpop.f32.mrf.mxu0
        %v1175 = vadd.f32 0.0, %v1174
        %1176 = vmatmul.f32.gmra.mxu0 %v1141
        %v1177 = vpop.f32.mrf.mxu0
        %v1178 = vadd.f32 0.0, %v1177
        %1179 = vmatmul.f32.gmra.mxu0 %v1143
        %v1180 = vpop.f32.mrf.mxu0
        %v1181 = vadd.f32 0.0, %v1180
        %1182 = vmatmul.f32.gmra.mxu0 %v1145
        %v1183 = vpop.f32.mrf.mxu0
        %v1184 = vadd.f32 0.0, %v1183
        %1185 = vmatmul.f32.gmra.mxu0 %v1147
        %v1186 = vpop.f32.mrf.mxu0
        %v1187 = vadd.f32 0.0, %v1186
        %1188 = vmatmul.f32.gmra.mxu0 %v1149
        %v1189 = vpop.f32.mrf.mxu0
        %v1190 = vadd.f32 0.0, %v1189
        %1191 = vdwg.mxu0
        %1192 = vmatpush.xpose.msra.mxu0 0.0
        %1193 = vmatpush.xpose.msra.mxu0 0.0
        %1194 = vmatpush.xpose.msra.mxu0 0.0
        %1195 = vmatpush.xpose.msra.mxu0 0.0
        %1196 = vmatpush.xpose.msra.mxu0 0.0
        %1197 = vmatpush.xpose.msra.mxu0 0.0
        %1198 = vmatpush.xpose.msra.mxu0 0.0
        %1199 = vmatpush.xpose.msra.mxu0 0.0
        %1200 = vmatpush.xpose.msra.mxu0 %v1134
        %1201 = vmatpush.xpose.msra.mxu0 %v1132
        %1202 = vmatpush.xpose.msra.mxu0 %v1130
        %1203 = vmatpush.xpose.msra.mxu0 %v1128
        %1204 = vmatpush.xpose.msra.mxu0 %v1126
        %1205 = vmatpush.xpose.msra.mxu0 %v1124
        %1206 = vmatpush.xpose.msra.mxu0 %v1122
        %1207 = vmatpush.xpose.msra.mxu0 %v1120
        %1208 = vmatmul.f32.gmra.mxu0 %v1136
        %v1209 = vpop.f32.mrf.mxu0
        %v1210 = vadd.f32 %v1169, %v1209
        %1211 = vmatmul.f32.gmra.mxu0 %v1138
        %v1212 = vpop.f32.mrf.mxu0
        %v1213 = vadd.f32 %v1172, %v1212
        %1214 = vmatmul.f32.gmra.mxu0 %v1140
        %v1215 = vpop.f32.mrf.mxu0
        %v1216 = vadd.f32 %v1175, %v1215
        %1217 = vmatmul.f32.gmra.mxu0 %v1142
        %v1218 = vpop.f32.mrf.mxu0
        %v1219 = vadd.f32 %v1178, %v1218
        %1220 = vmatmul.f32.gmra.mxu0 %v1144
        %v1221 = vpop.f32.mrf.mxu0
        %v1222 = vadd.f32 %v1181, %v1221
        %1223 = vmatmul.f32.gmra.mxu0 %v1146
        %v1224 = vpop.f32.mrf.mxu0
        %v1225 = vadd.f32 %v1184, %v1224
        %1226 = vmatmul.f32.gmra.mxu0 %v1148
        %v1227 = vpop.f32.mrf.mxu0
        %v1228 = vadd.f32 %v1187, %v1227
        %1229 = vmatmul.f32.gmra.mxu0 %v1150
        %v1230 = vpop.f32.mrf.mxu0
        %v1231 = vadd.f32 %v1190, %v1230
        %1232 = vdwg.mxu0
        %s1233 = scalar_lea.vmem [#allocation2], 128
        %v1234 = vld [vmem:[%s1233] sm:$0xff]
        %v1235 = vld [vmem:[%s1233 + $0x8] sm:$0xff]
        %v1236 = vld [vmem:[%s1233 + $0x10] sm:$0xff]
        %v1237 = vld [vmem:[%s1233 + $0x18] sm:$0xff]
        %v1238 = vld [vmem:[%s1233 + $0x20] sm:$0xff]
        %v1239 = vld [vmem:[%s1233 + $0x28] sm:$0xff]
        %v1240 = vld [vmem:[%s1233 + $0x30] sm:$0xff]
        %v1241 = vld [vmem:[%s1233 + $0x38] sm:$0xff]
        %v1242 = vadd.f32 %v1234, %v1210
        %v1243 = vadd.f32 %v1235, %v1213
        %v1244 = vadd.f32 %v1236, %v1216
        %v1245 = vadd.f32 %v1237, %v1219
        %v1246 = vadd.f32 %v1238, %v1222
        %v1247 = vadd.f32 %v1239, %v1225
        %v1248 = vadd.f32 %v1240, %v1228
        %v1249 = vadd.f32 %v1241, %v1231
        %1250 = vst.msk [vmem:[%s1233] sm:$0xff] %vm588, %v1242
        %1251 = vst.msk [vmem:[%s1233 + $0x8] sm:$0xff] %vm588, %v1243
        %1252 = vst.msk [vmem:[%s1233 + $0x10] sm:$0xff] %vm588, %v1244
        %1253 = vst.msk [vmem:[%s1233 + $0x18] sm:$0xff] %vm588, %v1245
        %1254 = vst.msk [vmem:[%s1233 + $0x20] sm:$0xff] %vm588, %v1246
        %1255 = vst.msk [vmem:[%s1233 + $0x28] sm:$0xff] %vm588, %v1247
        %1256 = vst.msk [vmem:[%s1233 + $0x30] sm:$0xff] %vm588, %v1248
        %1257 = vst.msk [vmem:[%s1233 + $0x38] sm:$0xff] %vm588, %v1249
        // Predicated region
        $region29: #{tpu_custom_call.1} parent=23 // pred_check
          %p1258 = pneg %p143
        $region30: #{tpu_custom_call.1} parent=23 // pred_check_branch
          %1260 = sbr.rel (%p1258) target = $region32
        $region31: #{tpu_custom_call.1} parent=23 // pred_region
          %v1261 = vld [vmem:[#allocation2] sm:$0xff]
          %v1262 = vld [vmem:[#allocation2 + $0x8] sm:$0xff]
          %v1263 = vld [vmem:[#allocation2 + $0x10] sm:$0xff]
          %v1264 = vld [vmem:[#allocation2 + $0x18] sm:$0xff]
          %v1265 = vld [vmem:[#allocation2 + $0x20] sm:$0xff]
          %v1266 = vld [vmem:[#allocation2 + $0x28] sm:$0xff]
          %v1267 = vld [vmem:[#allocation2 + $0x30] sm:$0xff]
          %v1268 = vld [vmem:[#allocation2 + $0x38] sm:$0xff]
          %v1269 = vsel %vm588, %v1261, 0.0
          %v1270 = vsel %vm588, %v1262, 0.0
          %v1271 = vadd.f32 %v1269, %v1270
          %v1272 = vsel %vm588, %v1263, 0.0
          %v1273 = vadd.f32 %v1271, %v1272
          %v1274 = vsel %vm588, %v1264, 0.0
          %v1275 = vadd.f32 %v1273, %v1274
          %v1276 = vsel %vm588, %v1265, 0.0
          %v1277 = vadd.f32 %v1275, %v1276
          %v1278 = vsel %vm588, %v1266, 0.0
          %v1279 = vadd.f32 %v1277, %v1278
          %v1280 = vsel %vm588, %v1267, 0.0
          %v1281 = vadd.f32 %v1279, %v1280
          %v1282 = vsel %vm588, %v1268, 0.0
          %v1283 = vadd.f32 %v1281, %v1282
          %1284 = vadd.xlane.f32.xlu0 %v1283
          %v1285 = vpop.xlane.xlu0 %1284
          %v1286 = vrot.slane %v1285, 4
          %v1287 = vadd.f32 %v1285, %v1286
          %v1288 = vrot.slane %v1287, 2
          %v1289 = vadd.f32 %v1287, %v1288
          %v1290 = vrot.slane %v1289, 1
          %v1291 = vadd.f32 %v1289, %v1290
          %s1292 = vtos %v1291
          %v1293 = vld [vmem:[%s903] sm:$0xff]
          %v1294 = vld [vmem:[%s903 + $0x8] sm:$0xff]
          %v1295 = vld [vmem:[%s903 + $0x10] sm:$0xff]
          %v1296 = vld [vmem:[%s903 + $0x18] sm:$0xff]
          %v1297 = vld [vmem:[%s903 + $0x20] sm:$0xff]
          %v1298 = vld [vmem:[%s903 + $0x28] sm:$0xff]
          %v1299 = vld [vmem:[%s903 + $0x30] sm:$0xff]
          %v1300 = vld [vmem:[%s903 + $0x38] sm:$0xff]
          %v1301 = vsel %vm588, %v1293, 0.0
          %v1302 = vsel %vm588, %v1294, 0.0
          %v1303 = vadd.f32 %v1301, %v1302
          %v1304 = vsel %vm588, %v1295, 0.0
          %v1305 = vadd.f32 %v1303, %v1304
          %v1306 = vsel %vm588, %v1296, 0.0
          %v1307 = vadd.f32 %v1305, %v1306
          %v1308 = vsel %vm588, %v1297, 0.0
          %v1309 = vadd.f32 %v1307, %v1308
          %v1310 = vsel %vm588, %v1298, 0.0
          %v1311 = vadd.f32 %v1309, %v1310
          %v1312 = vsel %vm588, %v1299, 0.0
          %v1313 = vadd.f32 %v1311, %v1312
          %v1314 = vsel %vm588, %v1300, 0.0
          %v1315 = vadd.f32 %v1313, %v1314
          %1316 = vadd.xlane.f32.xlu0 %v1315
          %v1317 = vpop.xlane.xlu0 %1316
          %v1318 = vrot.slane %v1317, 4
          %v1319 = vadd.f32 %v1317, %v1318
          %v1320 = vrot.slane %v1319, 2
          %v1321 = vadd.f32 %v1319, %v1320
          %v1322 = vrot.slane %v1321, 1
          %v1323 = vadd.f32 %v1321, %v1322
          %s1324 = vtos %v1323
          %s1325 = sadd.f32 %s1292, %s1324
          %v1326 = vld [vmem:[%s1233] sm:$0xff]
          %v1327 = vld [vmem:[%s1233 + $0x8] sm:$0xff]
          %v1328 = vld [vmem:[%s1233 + $0x10] sm:$0xff]
          %v1329 = vld [vmem:[%s1233 + $0x18] sm:$0xff]
          %v1330 = vld [vmem:[%s1233 + $0x20] sm:$0xff]
          %v1331 = vld [vmem:[%s1233 + $0x28] sm:$0xff]
          %v1332 = vld [vmem:[%s1233 + $0x30] sm:$0xff]
          %v1333 = vld [vmem:[%s1233 + $0x38] sm:$0xff]
          %v1334 = vsel %vm588, %v1326, 0.0
          %v1335 = vsel %vm588, %v1327, 0.0
          %v1336 = vadd.f32 %v1334, %v1335
          %v1337 = vsel %vm588, %v1328, 0.0
          %v1338 = vadd.f32 %v1336, %v1337
          %v1339 = vsel %vm588, %v1329, 0.0
          %v1340 = vadd.f32 %v1338, %v1339
          %v1341 = vsel %vm588, %v1330, 0.0
          %v1342 = vadd.f32 %v1340, %v1341
          %v1343 = vsel %vm588, %v1331, 0.0
          %v1344 = vadd.f32 %v1342, %v1343
          %v1345 = vsel %vm588, %v1332, 0.0
          %v1346 = vadd.f32 %v1344, %v1345
          %v1347 = vsel %vm588, %v1333, 0.0
          %v1348 = vadd.f32 %v1346, %v1347
          %1349 = vadd.xlane.f32.xlu0 %v1348
          %v1350 = vpop.xlane.xlu0 %1349
          %v1351 = vrot.slane %v1350, 4
          %v1352 = vadd.f32 %v1350, %v1351
          %v1353 = vrot.slane %v1352, 2
          %v1354 = vadd.f32 %v1352, %v1353
          %v1355 = vrot.slane %v1354, 1
          %v1356 = vadd.f32 %v1354, %v1355
          %s1357 = vtos %v1356
          %s1358 = sadd.f32 %s1325, %s1357
          %s1359 = sadd.f32 %s1358, 1e-06
          %v1360 = vstv %s1359
          %v1361 = vrcp.pop %v1360
          %v1362 = vmul.f32 %v1360, %v1361
          %v1363 = vsub.f32 1.0, %v1362
          %v1364 = vmul.f32 %v1361, %v1363
          %v1365 = vadd.f32 %v1361, %v1364
          %vm1366 = vweird.f32 %v1360
          %vm1367 = vweird.f32 %v1361
          %vm1368 = vmor %vm1366, %vm1367
          %v1369 = vsel %vm1368, %v1361, %v1365
          %v1370 = vand.u32 2147483647, %v1360
          %vm1371 = vcmp.eq.f32.partialorder %v1370, 8.507059e+37
          %v1372 = vand.u32 %v1360, 2147483648
          %v1373 = vor.u32 1.1754944e-38, %v1372
          %v1374 = vsel %vm1371, %v1373, %v1369
          %s1375 = vtos %v1374
          %v1376 = vstv %s1375
          %v1377 = vmul.f32 %v1261, %v1376
          %v1378 = vmul.f32 %v1262, %v1376
          %v1379 = vmul.f32 %v1263, %v1376
          %v1380 = vmul.f32 %v1264, %v1376
          %v1381 = vmul.f32 %v1265, %v1376
          %v1382 = vmul.f32 %v1266, %v1376
          %v1383 = vmul.f32 %v1267, %v1376
          %v1384 = vmul.f32 %v1268, %v1376
          %1385 = vst.msk [vmem:[%s132] sm:$0xff] %vm588, %v1377
          %1386 = vst.msk [vmem:[%s132 + $0x8] sm:$0xff] %vm588, %v1378
          %1387 = vst.msk [vmem:[%s132 + $0x10] sm:$0xff] %vm588, %v1379
          %1388 = vst.msk [vmem:[%s132 + $0x18] sm:$0xff] %vm588, %v1380
          %1389 = vst.msk [vmem:[%s132 + $0x20] sm:$0xff] %vm588, %v1381
          %1390 = vst.msk [vmem:[%s132 + $0x28] sm:$0xff] %vm588, %v1382
          %1391 = vst.msk [vmem:[%s132 + $0x30] sm:$0xff] %vm588, %v1383
          %1392 = vst.msk [vmem:[%s132 + $0x38] sm:$0xff] %vm588, %v1384
          %v1393 = vld [vmem:[%s903] sm:$0xff]
          %v1394 = vld [vmem:[%s903 + $0x8] sm:$0xff]
          %v1395 = vld [vmem:[%s903 + $0x10] sm:$0xff]
          %v1396 = vld [vmem:[%s903 + $0x18] sm:$0xff]
          %v1397 = vld [vmem:[%s903 + $0x20] sm:$0xff]
          %v1398 = vld [vmem:[%s903 + $0x28] sm:$0xff]
          %v1399 = vld [vmem:[%s903 + $0x30] sm:$0xff]
          %v1400 = vld [vmem:[%s903 + $0x38] sm:$0xff]
          %v1401 = vmul.f32 %v1393, %v1376
          %v1402 = vmul.f32 %v1394, %v1376
          %v1403 = vmul.f32 %v1395, %v1376
          %v1404 = vmul.f32 %v1396, %v1376
          %v1405 = vmul.f32 %v1397, %v1376
          %v1406 = vmul.f32 %v1398, %v1376
          %v1407 = vmul.f32 %v1399, %v1376
          %v1408 = vmul.f32 %v1400, %v1376
          %s1409 = scalar_lea.vmem %s132, 64 [#allocation3]
          %1410 = vst.msk [vmem:[%s1409] sm:$0xff] %vm588, %v1401
          %1411 = vst.msk [vmem:[%s1409 + $0x8] sm:$0xff] %vm588, %v1402
          %1412 = vst.msk [vmem:[%s1409 + $0x10] sm:$0xff] %vm588, %v1403
          %1413 = vst.msk [vmem:[%s1409 + $0x18] sm:$0xff] %vm588, %v1404
          %1414 = vst.msk [vmem:[%s1409 + $0x20] sm:$0xff] %vm588, %v1405
          %1415 = vst.msk [vmem:[%s1409 + $0x28] sm:$0xff] %vm588, %v1406
          %1416 = vst.msk [vmem:[%s1409 + $0x30] sm:$0xff] %vm588, %v1407
          %1417 = vst.msk [vmem:[%s1409 + $0x38] sm:$0xff] %vm588, %v1408
          %v1418 = vld [vmem:[%s1233] sm:$0xff]
          %v1419 = vld [vmem:[%s1233 + $0x8] sm:$0xff]
          %v1420 = vld [vmem:[%s1233 + $0x10] sm:$0xff]
          %v1421 = vld [vmem:[%s1233 + $0x18] sm:$0xff]
          %v1422 = vld [vmem:[%s1233 + $0x20] sm:$0xff]
          %v1423 = vld [vmem:[%s1233 + $0x28] sm:$0xff]
          %v1424 = vld [vmem:[%s1233 + $0x30] sm:$0xff]
          %v1425 = vld [vmem:[%s1233 + $0x38] sm:$0xff]
          %v1426 = vmul.f32 %v1418, %v1376
          %v1427 = vmul.f32 %v1419, %v1376
          %v1428 = vmul.f32 %v1420, %v1376
          %v1429 = vmul.f32 %v1421, %v1376
          %v1430 = vmul.f32 %v1422, %v1376
          %v1431 = vmul.f32 %v1423, %v1376
          %v1432 = vmul.f32 %v1424, %v1376
          %v1433 = vmul.f32 %v1425, %v1376
          %s1434 = scalar_lea.vmem %s132, 128 [#allocation3]
          %1435 = vst.msk [vmem:[%s1434] sm:$0xff] %vm588, %v1426
          %1436 = vst.msk [vmem:[%s1434 + $0x8] sm:$0xff] %vm588, %v1427
          %1437 = vst.msk [vmem:[%s1434 + $0x10] sm:$0xff] %vm588, %v1428
          %1438 = vst.msk [vmem:[%s1434 + $0x18] sm:$0xff] %vm588, %v1429
          %1439 = vst.msk [vmem:[%s1434 + $0x20] sm:$0xff] %vm588, %v1430
          %1440 = vst.msk [vmem:[%s1434 + $0x28] sm:$0xff] %vm588, %v1431
          %1441 = vst.msk [vmem:[%s1434 + $0x30] sm:$0xff] %vm588, %v1432
          %1442 = vst.msk [vmem:[%s1434 + $0x38] sm:$0xff] %vm588, %v1433
        $region32: #{tpu_custom_call.1} parent=23 // pred_fallthru
          _
        %s1443 = sand.u32 %s63, 1
        %s1444 = scalar_lea.sflag [#allocation4], %s1443
        %s1445 = sand.u32 %s63, 1
        %s1446 = smul.addr %s1445, 192
        %s1447 = scalar_lea.vmem [#allocation3], %s1446
        // Predicated region
        $region33: #{tpu_custom_call.1} parent=23 // pred_check
          %p1448 = pneg %p73
        $region34: #{tpu_custom_call.1} parent=23 // pred_check_branch
          %1450 = sbr.rel (%p1448) target = $region36
        $region35: #{tpu_custom_call.1} parent=23 // pred_region
          %1452 = vsyncadd %s1444, 0
          %s1453 = smul.addr %s19, 24
          %s1454 = smul.addr %s1453, 8
          %s1455 = scalar_lea.hbm %s1, %s1454
          %s1456 = sshll.u32 %s1447, 4
          %s1457 = int_to_ptr.vmem [resolvable:$true] %s1456
          %s1458 = sshll.u32 %s1455, 4
          %s1459 = int_to_ptr.hbm [resolvable:$true] %s1458
          %1464 = dma.vmem_to_hbm [thread:$0]  %s1457, 3072, %s1459, %s1444, 128, 128, 8
        $region36: #{tpu_custom_call.1} parent=23 // pred_fallthru
          _
      $region24: #{tpu_custom_call.1} parent=5 // pred_fallthru
        _
      %p1465 = scmp.le.s32.totalorder 2, %s10
      // Predicated region
      $region37: #{tpu_custom_call.1} parent=5 // pred_check
        %p1466 = pneg %p1465
      $region38: #{tpu_custom_call.1} parent=5 // pred_check_branch
        %1468 = sbr.rel (%p1466) target = $region40
      $region39: #{tpu_custom_call.1} parent=5 // pred_region
        %s1469 = ssub.s32 %s10, 2
        // Predicated region
        $region41: #{tpu_custom_call.1} parent=39 // pred_check
          %p1470 = pneg %p79
        $region42: #{tpu_custom_call.1} parent=39 // pred_check_branch
          %1472 = sbr.rel (%p1470) target = $region44
        $region43: #{tpu_custom_call.1} parent=39 // pred_region
          %s1473 = sand.u32 %s64, 1
          %s1474 = scalar_lea.sflag [#allocation4], %s1473
          %s1475 = sand.u32 %s64, 1
          %s1476 = smul.addr %s1475, 192
          %s1477 = scalar_lea.vmem [#allocation3], %s1476
          %1479 = dma.done %s1474, 3072
        $region44: #{tpu_custom_call.1} parent=39 // pred_fallthru
          _
      $region40: #{tpu_custom_call.1} parent=5 // pred_fallthru
        _
    $region6: #{tpu_custom_call.1} parent=1 // loop_footer
      %s14 = sadd.s32 1, %s10
    $region7: #{tpu_custom_call.1} parent=1 // loop_footer_branch
      %9 = sbr.rel target = $region3
    $region8: #{tpu_custom_call.1} parent=1 // loop_exit
      _
    %1480 = vsyncpa [#allocation4], 1
    %s1481 = scalar_lea.sflag [#allocation4], 1
    %1482 = vsyncpa %s1481, 1

</llo_original>
